<compile_context>
chip_gen: v6e
topology: v6e:2x2x1
jax: 0.10.0
libtpu: 0.0.40
codegen_flags: <defaults>
</compile_context>

<pallas_src>
import functools

import jax
import jax.numpy as jnp
from jax import lax
from jax.experimental import pallas as pl
from jax.experimental.pallas import tpu as pltpu


_VMEM_LIMIT = 32 * 1024 * 1024


# ---------------------------------------------------------------------------
# Kernel 1: fused [pos-embed add] -> attention -> [residual add] -> LayerNorm
# ---------------------------------------------------------------------------

def _attn_ln_kernel(qf_ref, qpe_ref, kv_ref, kpe_ref,
                    wq_ref, bq_ref, wk_ref, bk_ref, wv_ref, bv_ref,
                    wo_ref, bo_ref, g_ref, b_ref,
                    o_ref, *, num_heads, scale, add_pe, add_residual, eps):
    """One (batch, q-tile) grid step.

    qf_ref/qpe_ref : (1, TQ, E)   kv_ref/kpe_ref : (1, M, E)
    wq/wk/wv : (E, D) bf16   wo : (D, E) bf16   biases : (1, D)/(1, E) f32
    g/b (LayerNorm) : (1, E) f32   o_ref : (1, TQ, E)
    """
    qf = qf_ref[0].astype(jnp.float32)          # (TQ, E) residual / q features
    kv = kv_ref[0].astype(jnp.float32)          # (M, E)  k/v features

    if add_pe:
        q_in = qf + qpe_ref[0].astype(jnp.float32)
        k_in = kv + kpe_ref[0].astype(jnp.float32)
    else:
        q_in = qf
        k_in = kv

    # Full-width projections: bf16 MXU operands, f32 accumulation.
    # Softmax scale folded into qp.
    qp = (jnp.dot(q_in.astype(jnp.bfloat16), wq_ref[...],
                  preferred_element_type=jnp.float32) + bq_ref[...]) * scale
    kp = jnp.dot(k_in.astype(jnp.bfloat16), wk_ref[...],
                 preferred_element_type=jnp.float32) + bk_ref[...]
    vp = jnp.dot(kv.astype(jnp.bfloat16), wv_ref[...],
                 preferred_element_type=jnp.float32) + bv_ref[...]

    D = qp.shape[-1]
    dh = D // num_heads

    qp_bf = qp.astype(jnp.bfloat16)
    kp_bf = kp.astype(jnp.bfloat16)
    vp_bf = vp.astype(jnp.bfloat16)
    wo_full = wo_ref[...]                       # (D, E) bf16, loaded once

    # Per-head attention.  Each head's PV result is folded straight into the
    # output projection (accumulated into a full-width (TQ, E) f32 value), so
    # there are no sub-128-lane scratch stores and per-head intermediates die
    # immediately.
    out = jnp.zeros((qp.shape[0], wo_full.shape[-1]), jnp.float32)   # (TQ, E)
    for h in range(num_heads):
        lo, hi = h * dh, (h + 1) * dh
        qh = qp_bf[:, lo:hi]                    # (TQ, dh)
        kh = kp_bf[:, lo:hi]                    # (M, dh)
        vh = vp_bf[:, lo:hi]                    # (M, dh)

        # Scores: contract the last dims directly (no explicit kh.T relayout).
        s = lax.dot_general(qh, kh, (((1,), (1,)), ((), ())),
                            preferred_element_type=jnp.float32)      # (TQ, M)
        s = s - jnp.max(s, axis=-1, keepdims=True)                   # stable
        p = jnp.exp(s)
        p = p * pl.reciprocal(jnp.sum(p, axis=-1, keepdims=True), approx=True)

        pv = jnp.dot(p.astype(jnp.bfloat16), vh,
                     preferred_element_type=jnp.float32)             # (TQ, dh)
        out = out + jnp.dot(pv.astype(jnp.bfloat16), wo_full[lo:hi, :],
                            preferred_element_type=jnp.float32)      # (TQ, E)
    out = out + bo_ref[...]

    # Residual add + LayerNorm epilogue (f32).
    h_val = qf + out if add_residual else out
    mean = jnp.mean(h_val, axis=-1, keepdims=True)
    c = h_val - mean
    var = jnp.mean(c * c, axis=-1, keepdims=True)
    y = c * lax.rsqrt(var + eps) * g_ref[...] + b_ref[...]
    o_ref[0] = y.astype(o_ref.dtype)


def attention_add_layernorm(q_feat, q_pe, kv_feat, k_pe, attn_params, ln_params,
                            *, num_heads, downsample_rate=1, add_pe=True,
                            add_residual=True, eps=1e-5, block_q=512):
    """Returns LN(residual + OutProj(MHA(q_feat[+q_pe], kv_feat[+k_pe], kv_feat))).

    q_feat: (B, Nq, E)  kv_feat: (B, M, E).  When add_residual=False the LN is
    applied to the attention output alone (skip_first_layer_pos_embed path).
    """
    B, Nq, E = q_feat.shape
    _, M, _ = kv_feat.shape
    D = E // downsample_rate
    assert D % num_heads == 0
    scale = float((D // num_heads) ** -0.5)

    tq = min(block_q, Nq)
    if Nq % tq != 0:
        tq = Nq

    bf = jnp.bfloat16
    wq, bq = attn_params["wq"].astype(bf), attn_params["bq"]
    wk, bk = attn_params["wk"].astype(bf), attn_params["bk"]
    wv, bv = attn_params["wv"].astype(bf), attn_params["bv"]
    wo, bo = attn_params["wo"].astype(bf), attn_params["bo"]
    gamma, beta = ln_params["gamma"], ln_params["beta"]

    kernel = functools.partial(_attn_ln_kernel, num_heads=num_heads,
                               scale=scale, add_pe=add_pe,
                               add_residual=add_residual, eps=eps)

    grid_spec = pltpu.PrefetchScalarGridSpec(
        num_scalar_prefetch=0,
        grid=(B, Nq // tq),
        in_specs=[
            pl.BlockSpec((1, tq, E), lambda b, i: (b, i, 0)),   # q_feat
            pl.BlockSpec((1, tq, E), lambda b, i: (b, i, 0)),   # q_pe
            pl.BlockSpec((1, M, E), lambda b, i: (b, 0, 0)),    # kv_feat
            pl.BlockSpec((1, M, E), lambda b, i: (b, 0, 0)),    # k_pe
            pl.BlockSpec((E, D), lambda b, i: (0, 0)),          # wq (bf16)
            pl.BlockSpec((1, D), lambda b, i: (0, 0)),          # bq
            pl.BlockSpec((E, D), lambda b, i: (0, 0)),          # wk
            pl.BlockSpec((1, D), lambda b, i: (0, 0)),          # bk
            pl.BlockSpec((E, D), lambda b, i: (0, 0)),          # wv
            pl.BlockSpec((1, D), lambda b, i: (0, 0)),          # bv
            pl.BlockSpec((D, E), lambda b, i: (0, 0)),          # wo (bf16)
            pl.BlockSpec((1, E), lambda b, i: (0, 0)),          # bo
            pl.BlockSpec((1, E), lambda b, i: (0, 0)),          # gamma
            pl.BlockSpec((1, E), lambda b, i: (0, 0)),          # beta
        ],
        out_specs=pl.BlockSpec((1, tq, E), lambda b, i: (b, i, 0)),
    )

    return pl.pallas_call(
        kernel,
        out_shape=jax.ShapeDtypeStruct((B, Nq, E), q_feat.dtype),
        grid_spec=grid_spec,
        compiler_params=pltpu.CompilerParams(
            dimension_semantics=("parallel", "parallel"),
            vmem_limit_bytes=_VMEM_LIMIT),
    )(q_feat, q_pe, kv_feat, k_pe, wq, bq, wk, bk, wv, bv, wo, bo, gamma, beta)


# ---------------------------------------------------------------------------
# Kernel 2: fused TwoLayerMLP -> residual add -> LayerNorm
# ---------------------------------------------------------------------------

def _mlp_ln_kernel(x_ref, w1_ref, b1_ref, w2_ref, b2_ref, g_ref, b_ref, o_ref,
                   *, eps):
    x = x_ref[0].astype(jnp.float32)                                  # (TN, E)
    h = jnp.dot(x.astype(jnp.bfloat16), w1_ref[...],
                preferred_element_type=jnp.float32) + b1_ref[...]
    h = jnp.maximum(h, 0.0)            # ReLU (CrossAttentionBlock default act)
    m = jnp.dot(h.astype(jnp.bfloat16), w2_ref[...],
                preferred_element_type=jnp.float32) + b2_ref[...]
    r = x + m                                                         # residual
    mean = jnp.mean(r, axis=-1, keepdims=True)
    c = r - mean
    var = jnp.mean(c * c, axis=-1, keepdims=True)
    y = c * lax.rsqrt(var + eps) * g_ref[...] + b_ref[...]
    o_ref[0] = y.astype(o_ref.dtype)


def mlp_add_layernorm(x, mlp_params, ln_params, *, eps=1e-5, block_n=1024):
    B, N, E = x.shape
    Mh = mlp_params["w1"].shape[1]
    tn = min(block_n, N)
    if N % tn != 0:
        tn = N

    bf = jnp.bfloat16
    w1, b1 = mlp_params["w1"].astype(bf), mlp_params["b1"]
    w2, b2 = mlp_params["w2"].astype(bf), mlp_params["b2"]
    gamma, beta = ln_params["gamma"], ln_params["beta"]

    kernel = functools.partial(_mlp_ln_kernel, eps=eps)
    grid_spec = pltpu.PrefetchScalarGridSpec(
        num_scalar_prefetch=0,
        grid=(B, N // tn),
        in_specs=[
            pl.BlockSpec((1, tn, E), lambda b, i: (b, i, 0)),
            pl.BlockSpec((E, Mh), lambda b, i: (0, 0)),
            pl.BlockSpec((1, Mh), lambda b, i: (0, 0)),
            pl.BlockSpec((Mh, E), lambda b, i: (0, 0)),
            pl.BlockSpec((1, E), lambda b, i: (0, 0)),
            pl.BlockSpec((1, E), lambda b, i: (0, 0)),
            pl.BlockSpec((1, E), lambda b, i: (0, 0)),
        ],
        out_specs=pl.BlockSpec((1, tn, E), lambda b, i: (b, i, 0)),
    )
    return pl.pallas_call(
        kernel,
        out_shape=jax.ShapeDtypeStruct((B, N, E), x.dtype),
        grid_spec=grid_spec,
        compiler_params=pltpu.CompilerParams(
            dimension_semantics=("parallel", "parallel"),
            vmem_limit_bytes=_VMEM_LIMIT),
    )(x, w1, b1, w2, b2, gamma, beta)


# ---------------------------------------------------------------------------
# CrossAttentionBlock forward (one fused pallas_call per stage)
# ---------------------------------------------------------------------------

def cross_attention_block(query, key, query_pos_embed, key_pos_embed, params, *,
                          num_heads, attention_downsample_rate=2,
                          skip_first_layer_pos_embed=False):
    # Stage 1: self-attn (+pos-embed, +residual unless skipping) + LN1.
    query = attention_add_layernorm(
        query, query_pos_embed, query, query_pos_embed,
        params["self_attn"], params["norm1"],
        num_heads=num_heads, downsample_rate=1,
        add_pe=not skip_first_layer_pos_embed,
        add_residual=not skip_first_layer_pos_embed)

    # Stage 2: cross attention tokens -> image, + residual + LN2.
    query = attention_add_layernorm(
        query, query_pos_embed, key, key_pos_embed,
        params["cross_t2i"], params["norm2"],
        num_heads=num_heads, downsample_rate=attention_downsample_rate)

    # Stage 3: MLP + residual + LN3.
    query = mlp_add_layernorm(query, params["mlp"], params["norm3"])

    # Stage 4: cross attention image -> tokens, + residual + LN4 (updates key).
    key = attention_add_layernorm(
        key, key_pos_embed, query, query_pos_embed,
        params["cross_i2t"], params["norm4"],
        num_heads=num_heads, downsample_rate=attention_downsample_rate)
    return query, key


# ---------------------------------------------------------------------------
# Pure-JAX reference (mirrors the PyTorch forward, f32 everywhere)
# ---------------------------------------------------------------------------

def _ref_attention(q, k, v, p, *, num_heads, downsample_rate):
    E = q.shape[-1]
    D = E // downsample_rate
    dh = D // num_heads
    scale = dh ** -0.5

    def split(x):  # 'b n (h d) -> b h n d'
        B, N, _ = x.shape
        return x.reshape(B, N, num_heads, dh).transpose(0, 2, 1, 3)

    qh = split(q @ p["wq"] + p["bq"])
    kh = split(k @ p["wk"] + p["bk"])
    vh = split(v @ p["wv"] + p["bv"])
    s = jnp.einsum("bhnd,bhmd->bhnm", qh, kh) * scale
    a = jax.nn.softmax(s, axis=-1)
    o = jnp.einsum("bhnm,bhmd->bhnd", a, vh)
    o = o.transpose(0, 2, 1, 3).reshape(q.shape[0], q.shape[1], D)
    return o @ p["wo"] + p["bo"]


def _ref_layer_norm(x, p, eps=1e-5):
    mean = jnp.mean(x, axis=-1, keepdims=True)
    var = jnp.mean((x - mean) ** 2, axis=-1, keepdims=True)
    return (x - mean) / jnp.sqrt(var + eps) * p["gamma"] + p["beta"]


def _ref_mlp(x, p):
    return jnp.maximum(x @ p["w1"] + p["b1"], 0.0) @ p["w2"] + p["b2"]


def _ref_block(query, key, query_pe, key_pe, params, *, num_heads,
               attention_downsample_rate, skip_first_layer_pos_embed=False):
    if skip_first_layer_pos_embed:
        query = _ref_attention(query, query, query, params["self_attn"],
                               num_heads=num_heads, downsample_rate=1)
    else:
        q_pe = query + query_pe
        attn = _ref_attention(q_pe, q_pe, query, params["self_attn"],
                              num_heads=num_heads, downsample_rate=1)
        query = query + attn
    query = _ref_layer_norm(query, params["norm1"])

    q_pe = query + query_pe
    k_pe = key + key_pe
    attn = _ref_attention(q_pe, k_pe, key, params["cross_t2i"],
                          num_heads=num_heads,
                          downsample_rate=attention_downsample_rate)
    query = _ref_layer_norm(query + attn, params["norm2"])

    query = _ref_layer_norm(query + _ref_mlp(query, params["mlp"]),
                            params["norm3"])

    q_pe = query + query_pe
    k_pe = key + key_pe
    attn = _ref_attention(k_pe, q_pe, query, params["cross_i2t"],
                          num_heads=num_heads,
                          downsample_rate=attention_downsample_rate)
    key = _ref_layer_norm(key + attn, params["norm4"])
    return query, key


# ---------------------------------------------------------------------------
# Parameter init (weights stored pre-transposed as (in_features, out_features))
# ---------------------------------------------------------------------------

def _uniform(key, shape, s):
    return jax.random.uniform(key, shape, jnp.float32, -s, s)


def _init_attn_params(key, embed_dim, downsample_rate):
    D = embed_dim // downsample_rate
    ks = jax.random.split(key, 8)
    si = 1.0 / (embed_dim ** 0.5)
    sd = 1.0 / (D ** 0.5)
    return {
        "wq": _uniform(ks[0], (embed_dim, D), si), "bq": _uniform(ks[1], (1, D), si),
        "wk": _uniform(ks[2], (embed_dim, D), si), "bk": _uniform(ks[3], (1, D), si),
        "wv": _uniform(ks[4], (embed_dim, D), si), "bv": _uniform(ks[5], (1, D), si),
        "wo": _uniform(ks[6], (D, embed_dim), sd), "bo": _uniform(ks[7], (1, embed_dim), sd),
    }


def _init_ln_params(key, embed_dim):
    k1, k2 = jax.random.split(key)
    return {
        "gamma": 1.0 + 0.1 * jax.random.normal(k1, (1, embed_dim), jnp.float32),
        "beta": 0.1 * jax.random.normal(k2, (1, embed_dim), jnp.float32),
    }


def _init_mlp_params(key, embed_dim, mlp_dim):
    ks = jax.random.split(key, 4)
    s1 = 1.0 / (embed_dim ** 0.5)
    s2 = 1.0 / (mlp_dim ** 0.5)
    return {
        "w1": _uniform(ks[0], (embed_dim, mlp_dim), s1),
        "b1": _uniform(ks[1], (1, mlp_dim), s1),
        "w2": _uniform(ks[2], (mlp_dim, embed_dim), s2),
        "b2": _uniform(ks[3], (1, embed_dim), s2),
    }


def _init_params(key, embed_dim, mlp_dim, attention_downsample_rate):
    ks = jax.random.split(key, 8)
    return {
        "self_attn": _init_attn_params(ks[0], embed_dim, 1),
        "cross_t2i": _init_attn_params(ks[1], embed_dim, attention_downsample_rate),
        "cross_i2t": _init_attn_params(ks[2], embed_dim, attention_downsample_rate),
        "norm1": _init_ln_params(ks[3], embed_dim),
        "norm2": _init_ln_params(ks[4], embed_dim),
        "norm3": _init_ln_params(ks[5], embed_dim),
        "norm4": _init_ln_params(ks[6], embed_dim),
        "mlp": _init_mlp_params(ks[7], embed_dim, mlp_dim),
    }


if __name__ == "__main__":
    embed_dim = 32
    num_heads = 4
    mlp_dim = 64
    attention_downsample_rate = 2
    B, Nq, Nkv = 2, 8, 16

    root = jax.random.PRNGKey(0)
    kq, kk, kqp, kkp, kprm = jax.random.split(root, 5)
    query = jax.random.normal(kq, (B, Nq, embed_dim), jnp.float32)
    key_feat = jax.random.normal(kk, (B, Nkv, embed_dim), jnp.float32)
    query_pe = jax.random.normal(kqp, (B, Nq, embed_dim), jnp.float32)
    key_pe = jax.random.normal(kkp, (B, Nkv, embed_dim), jnp.float32)
    params = _init_params(kprm, embed_dim, mlp_dim, attention_downsample_rate)

    q_out, k_out = cross_attention_block(
        query, key_feat, query_pe, key_pe, params,
        num_heads=num_heads,
        attention_downsample_rate=attention_downsample_rate)
    q_out, k_out = jax.block_until_ready((q_out, k_out))

    q_ref, k_ref = _ref_block(
        query, key_feat, query_pe, key_pe, params,
        num_heads=num_heads,
        attention_downsample_rate=attention_downsample_rate)

    assert q_out.shape == (B, Nq, embed_dim)
    assert k_out.shape == (B, Nkv, embed_dim)
    # bf16 MXU operands + approx softmax reciprocal vs. pure-f32 reference:
    # loosened (but still bug-catching) tolerance.
    assert jnp.allclose(q_out, q_ref, atol=5e-2, rtol=5e-2), \
        float(jnp.max(jnp.abs(q_out - q_ref)))
    assert jnp.allclose(k_out, k_ref, atol=5e-2, rtol=5e-2), \
        float(jnp.max(jnp.abs(k_out - k_ref)))

    print("KERNEL_OK")
</pallas_src>

<mosaic_0001>
module attributes {stable_mosaic.version = 11 : i64} {
  func.func @_attn_ln_kernel(%arg0: i32, %arg1: i32, %arg2: memref<1x8x32xf32, #tpu.memory_space<vmem>>, %arg3: memref<1x8x32xf32, #tpu.memory_space<vmem>>, %arg4: memref<1x8x32xf32, #tpu.memory_space<vmem>>, %arg5: memref<1x8x32xf32, #tpu.memory_space<vmem>>, %arg6: memref<32x32xbf16, #tpu.memory_space<vmem>>, %arg7: memref<1x32xf32, #tpu.memory_space<vmem>>, %arg8: memref<32x32xbf16, #tpu.memory_space<vmem>>, %arg9: memref<1x32xf32, #tpu.memory_space<vmem>>, %arg10: memref<32x32xbf16, #tpu.memory_space<vmem>>, %arg11: memref<1x32xf32, #tpu.memory_space<vmem>>, %arg12: memref<32x32xbf16, #tpu.memory_space<vmem>>, %arg13: memref<1x32xf32, #tpu.memory_space<vmem>>, %arg14: memref<1x32xf32, #tpu.memory_space<vmem>>, %arg15: memref<1x32xf32, #tpu.memory_space<vmem>>, %arg16: memref<1x8x32xf32, #tpu.memory_space<vmem>>) attributes {dimension_semantics = [#tpu.dimension_semantics<parallel>, #tpu.dimension_semantics<parallel>], iteration_bounds = array<i64: 2, 1>, scalar_prefetch = 0 : i64, scratch_operands = 0 : i64, tpu.core_type = #tpu.core_type<tc>, window_params = [{transform_indices = @transform_0, window_bounds = array<i64: 1, 8, 32>}, {transform_indices = @transform_1, window_bounds = array<i64: 1, 8, 32>}, {transform_indices = @transform_2, window_bounds = array<i64: 1, 8, 32>}, {transform_indices = @transform_3, window_bounds = array<i64: 1, 8, 32>}, {pipeline_mode = #tpu.pipeline_mode<synchronous>, transform_indices = @transform_4, window_bounds = array<i64: 32, 32>}, {pipeline_mode = #tpu.pipeline_mode<synchronous>, transform_indices = @transform_5, window_bounds = array<i64: 1, 32>}, {pipeline_mode = #tpu.pipeline_mode<synchronous>, transform_indices = @transform_6, window_bounds = array<i64: 32, 32>}, {pipeline_mode = #tpu.pipeline_mode<synchronous>, transform_indices = @transform_7, window_bounds = array<i64: 1, 32>}, {pipeline_mode = #tpu.pipeline_mode<synchronous>, transform_indices = @transform_8, window_bounds = array<i64: 32, 32>}, {pipeline_mode = #tpu.pipeline_mode<synchronous>, transform_indices = @transform_9, window_bounds = array<i64: 1, 32>}, {pipeline_mode = #tpu.pipeline_mode<synchronous>, transform_indices = @transform_10, window_bounds = array<i64: 32, 32>}, {pipeline_mode = #tpu.pipeline_mode<synchronous>, transform_indices = @transform_11, window_bounds = array<i64: 1, 32>}, {pipeline_mode = #tpu.pipeline_mode<synchronous>, transform_indices = @transform_12, window_bounds = array<i64: 1, 32>}, {pipeline_mode = #tpu.pipeline_mode<synchronous>, transform_indices = @transform_13, window_bounds = array<i64: 1, 32>}, {transform_indices = @transform_14, window_bounds = array<i64: 1, 8, 32>}]} {
    %c0 = arith.constant 0 : index
    %c0_0 = arith.constant 0 : index
    %c0_1 = arith.constant 0 : index
    %0 = vector.load %arg2[%c0, %c0_0, %c0_1] : memref<1x8x32xf32, #tpu.memory_space<vmem>>, vector<1x8x32xf32>
    %1 = vector.shape_cast %0 : vector<1x8x32xf32> to vector<8x32xf32>
    %c0_2 = arith.constant 0 : index
    %c0_3 = arith.constant 0 : index
    %c0_4 = arith.constant 0 : index
    %2 = vector.load %arg4[%c0_2, %c0_3, %c0_4] : memref<1x8x32xf32, #tpu.memory_space<vmem>>, vector<1x8x32xf32>
    %3 = vector.shape_cast %2 : vector<1x8x32xf32> to vector<8x32xf32>
    %c0_5 = arith.constant 0 : index
    %c0_6 = arith.constant 0 : index
    %c0_7 = arith.constant 0 : index
    %4 = vector.load %arg3[%c0_5, %c0_6, %c0_7] : memref<1x8x32xf32, #tpu.memory_space<vmem>>, vector<1x8x32xf32>
    %5 = vector.shape_cast %4 : vector<1x8x32xf32> to vector<8x32xf32>
    %6 = arith.addf %1, %5 : vector<8x32xf32>
    %c0_8 = arith.constant 0 : index
    %c0_9 = arith.constant 0 : index
    %c0_10 = arith.constant 0 : index
    %7 = vector.load %arg5[%c0_8, %c0_9, %c0_10] : memref<1x8x32xf32, #tpu.memory_space<vmem>>, vector<1x8x32xf32>
    %8 = vector.shape_cast %7 : vector<1x8x32xf32> to vector<8x32xf32>
    %9 = arith.addf %3, %8 : vector<8x32xf32>
    %10 = arith.truncf %6 : vector<8x32xf32> to vector<8x32xbf16>
    %c0_11 = arith.constant 0 : index
    %c0_12 = arith.constant 0 : index
    %11 = vector.load %arg6[%c0_11, %c0_12] : memref<32x32xbf16, #tpu.memory_space<vmem>>, vector<32x32xbf16>
    %cst = arith.constant dense<0.000000e+00> : vector<8x32xf32>
    %12 = tpu.matmul %10, %11, %cst {dimension_numbers = #tpu.dot_dimension_numbers<[1], [0], [0], [1], [0, 0, 1, 1], [], []>} : vector<8x32xbf16>, vector<32x32xbf16>, vector<8x32xf32> -> vector<8x32xf32>
    %c0_13 = arith.constant 0 : index
    %c0_14 = arith.constant 0 : index
    %13 = vector.load %arg7[%c0_13, %c0_14] : memref<1x32xf32, #tpu.memory_space<vmem>>, vector<1x32xf32>
    %14 = vector.broadcast %13 : vector<1x32xf32> to vector<8x32xf32>
    %15 = arith.addf %12, %14 : vector<8x32xf32>
    %cst_15 = arith.constant 0.353553385 : f32
    %16 = vector.broadcast %cst_15 : f32 to vector<8x32xf32>
    %17 = arith.mulf %15, %16 : vector<8x32xf32>
    %18 = arith.truncf %9 : vector<8x32xf32> to vector<8x32xbf16>
    %c0_16 = arith.constant 0 : index
    %c0_17 = arith.constant 0 : index
    %19 = vector.load %arg8[%c0_16, %c0_17] : memref<32x32xbf16, #tpu.memory_space<vmem>>, vector<32x32xbf16>
    %cst_18 = arith.constant dense<0.000000e+00> : vector<8x32xf32>
    %20 = tpu.matmul %18, %19, %cst_18 {dimension_numbers = #tpu.dot_dimension_numbers<[1], [0], [0], [1], [0, 0, 1, 1], [], []>} : vector<8x32xbf16>, vector<32x32xbf16>, vector<8x32xf32> -> vector<8x32xf32>
    %c0_19 = arith.constant 0 : index
    %c0_20 = arith.constant 0 : index
    %21 = vector.load %arg9[%c0_19, %c0_20] : memref<1x32xf32, #tpu.memory_space<vmem>>, vector<1x32xf32>
    %22 = vector.broadcast %21 : vector<1x32xf32> to vector<8x32xf32>
    %23 = arith.addf %20, %22 : vector<8x32xf32>
    %24 = arith.truncf %3 : vector<8x32xf32> to vector<8x32xbf16>
    %c0_21 = arith.constant 0 : index
    %c0_22 = arith.constant 0 : index
    %25 = vector.load %arg10[%c0_21, %c0_22] : memref<32x32xbf16, #tpu.memory_space<vmem>>, vector<32x32xbf16>
    %cst_23 = arith.constant dense<0.000000e+00> : vector<8x32xf32>
    %26 = tpu.matmul %24, %25, %cst_23 {dimension_numbers = #tpu.dot_dimension_numbers<[1], [0], [0], [1], [0, 0, 1, 1], [], []>} : vector<8x32xbf16>, vector<32x32xbf16>, vector<8x32xf32> -> vector<8x32xf32>
    %c0_24 = arith.constant 0 : index
    %c0_25 = arith.constant 0 : index
    %27 = vector.load %arg11[%c0_24, %c0_25] : memref<1x32xf32, #tpu.memory_space<vmem>>, vector<1x32xf32>
    %28 = vector.broadcast %27 : vector<1x32xf32> to vector<8x32xf32>
    %29 = arith.addf %26, %28 : vector<8x32xf32>
    %30 = arith.truncf %17 : vector<8x32xf32> to vector<8x32xbf16>
    %31 = arith.truncf %23 : vector<8x32xf32> to vector<8x32xbf16>
    %32 = arith.truncf %29 : vector<8x32xf32> to vector<8x32xbf16>
    %c0_26 = arith.constant 0 : index
    %c0_27 = arith.constant 0 : index
    %33 = vector.load %arg12[%c0_26, %c0_27] : memref<32x32xbf16, #tpu.memory_space<vmem>>, vector<32x32xbf16>
    %cst_28 = arith.constant 0.000000e+00 : f32
    %34 = vector.broadcast %cst_28 : f32 to vector<8x32xf32>
    %35 = vector.extract_strided_slice %30 {offsets = [0, 0], sizes = [8, 8], strides = [1, 1]} : vector<8x32xbf16> to vector<8x8xbf16>
    %36 = vector.extract_strided_slice %31 {offsets = [0, 0], sizes = [8, 8], strides = [1, 1]} : vector<8x32xbf16> to vector<8x8xbf16>
    %37 = vector.extract_strided_slice %32 {offsets = [0, 0], sizes = [8, 8], strides = [1, 1]} : vector<8x32xbf16> to vector<8x8xbf16>
    %cst_29 = arith.constant dense<0.000000e+00> : vector<8x8xf32>
    %38 = tpu.matmul %35, %36, %cst_29 {dimension_numbers = #tpu.dot_dimension_numbers<[1], [1], [0], [0], [0, 0, 1, 0], [], []>} : vector<8x8xbf16>, vector<8x8xbf16>, vector<8x8xf32> -> vector<8x8xf32>
    %cst_30 = arith.constant dense<0xFF800000> : vector<8xf32>
    %39 = vector.multi_reduction <maximumf>, %38, %cst_30 [1] : vector<8x8xf32> to vector<8xf32>
    %40 = vector.shape_cast %39 : vector<8xf32> to vector<8x1xf32>
    %41 = vector.broadcast %40 : vector<8x1xf32> to vector<8x8xf32>
    %42 = arith.subf %38, %41 : vector<8x8xf32>
    %43 = math.exp %42 : vector<8x8xf32>
    %cst_31 = arith.constant dense<0.000000e+00> : vector<8xf32>
    %44 = vector.multi_reduction <add>, %43, %cst_31 [1] : vector<8x8xf32> to vector<8xf32>
    %45 = vector.shape_cast %44 : vector<8xf32> to vector<8x1xf32>
    %46 = tpu.reciprocal %45 {approx = true} : vector<8x1xf32> -> vector<8x1xf32>
    %47 = vector.broadcast %46 : vector<8x1xf32> to vector<8x8xf32>
    %48 = arith.mulf %43, %47 : vector<8x8xf32>
    %49 = arith.truncf %48 : vector<8x8xf32> to vector<8x8xbf16>
    %cst_32 = arith.constant dense<0.000000e+00> : vector<8x8xf32>
    %50 = tpu.matmul %49, %37, %cst_32 {dimension_numbers = #tpu.dot_dimension_numbers<[1], [0], [0], [1], [0, 0, 1, 1], [], []>} : vector<8x8xbf16>, vector<8x8xbf16>, vector<8x8xf32> -> vector<8x8xf32>
    %51 = arith.truncf %50 : vector<8x8xf32> to vector<8x8xbf16>
    %52 = vector.extract_strided_slice %33 {offsets = [0, 0], sizes = [8, 32], strides = [1, 1]} : vector<32x32xbf16> to vector<8x32xbf16>
    %cst_33 = arith.constant dense<0.000000e+00> : vector<8x32xf32>
    %53 = tpu.matmul %51, %52, %cst_33 {dimension_numbers = #tpu.dot_dimension_numbers<[1], [0], [0], [1], [0, 0, 1, 1], [], []>} : vector<8x8xbf16>, vector<8x32xbf16>, vector<8x32xf32> -> vector<8x32xf32>
    %54 = arith.addf %34, %53 : vector<8x32xf32>
    %55 = vector.extract_strided_slice %30 {offsets = [0, 8], sizes = [8, 8], strides = [1, 1]} : vector<8x32xbf16> to vector<8x8xbf16>
    %56 = vector.extract_strided_slice %31 {offsets = [0, 8], sizes = [8, 8], strides = [1, 1]} : vector<8x32xbf16> to vector<8x8xbf16>
    %57 = vector.extract_strided_slice %32 {offsets = [0, 8], sizes = [8, 8], strides = [1, 1]} : vector<8x32xbf16> to vector<8x8xbf16>
    %cst_34 = arith.constant dense<0.000000e+00> : vector<8x8xf32>
    %58 = tpu.matmul %55, %56, %cst_34 {dimension_numbers = #tpu.dot_dimension_numbers<[1], [1], [0], [0], [0, 0, 1, 0], [], []>} : vector<8x8xbf16>, vector<8x8xbf16>, vector<8x8xf32> -> vector<8x8xf32>
    %cst_35 = arith.constant dense<0xFF800000> : vector<8xf32>
    %59 = vector.multi_reduction <maximumf>, %58, %cst_35 [1] : vector<8x8xf32> to vector<8xf32>
    %60 = vector.shape_cast %59 : vector<8xf32> to vector<8x1xf32>
    %61 = vector.broadcast %60 : vector<8x1xf32> to vector<8x8xf32>
    %62 = arith.subf %58, %61 : vector<8x8xf32>
    %63 = math.exp %62 : vector<8x8xf32>
    %cst_36 = arith.constant dense<0.000000e+00> : vector<8xf32>
    %64 = vector.multi_reduction <add>, %63, %cst_36 [1] : vector<8x8xf32> to vector<8xf32>
    %65 = vector.shape_cast %64 : vector<8xf32> to vector<8x1xf32>
    %66 = tpu.reciprocal %65 {approx = true} : vector<8x1xf32> -> vector<8x1xf32>
    %67 = vector.broadcast %66 : vector<8x1xf32> to vector<8x8xf32>
    %68 = arith.mulf %63, %67 : vector<8x8xf32>
    %69 = arith.truncf %68 : vector<8x8xf32> to vector<8x8xbf16>
    %cst_37 = arith.constant dense<0.000000e+00> : vector<8x8xf32>
    %70 = tpu.matmul %69, %57, %cst_37 {dimension_numbers = #tpu.dot_dimension_numbers<[1], [0], [0], [1], [0, 0, 1, 1], [], []>} : vector<8x8xbf16>, vector<8x8xbf16>, vector<8x8xf32> -> vector<8x8xf32>
    %71 = arith.truncf %70 : vector<8x8xf32> to vector<8x8xbf16>
    %72 = vector.extract_strided_slice %33 {offsets = [8, 0], sizes = [8, 32], strides = [1, 1]} : vector<32x32xbf16> to vector<8x32xbf16>
    %cst_38 = arith.constant dense<0.000000e+00> : vector<8x32xf32>
    %73 = tpu.matmul %71, %72, %cst_38 {dimension_numbers = #tpu.dot_dimension_numbers<[1], [0], [0], [1], [0, 0, 1, 1], [], []>} : vector<8x8xbf16>, vector<8x32xbf16>, vector<8x32xf32> -> vector<8x32xf32>
    %74 = arith.addf %54, %73 : vector<8x32xf32>
    %75 = vector.extract_strided_slice %30 {offsets = [0, 16], sizes = [8, 8], strides = [1, 1]} : vector<8x32xbf16> to vector<8x8xbf16>
    %76 = vector.extract_strided_slice %31 {offsets = [0, 16], sizes = [8, 8], strides = [1, 1]} : vector<8x32xbf16> to vector<8x8xbf16>
    %77 = vector.extract_strided_slice %32 {offsets = [0, 16], sizes = [8, 8], strides = [1, 1]} : vector<8x32xbf16> to vector<8x8xbf16>
    %cst_39 = arith.constant dense<0.000000e+00> : vector<8x8xf32>
    %78 = tpu.matmul %75, %76, %cst_39 {dimension_numbers = #tpu.dot_dimension_numbers<[1], [1], [0], [0], [0, 0, 1, 0], [], []>} : vector<8x8xbf16>, vector<8x8xbf16>, vector<8x8xf32> -> vector<8x8xf32>
    %cst_40 = arith.constant dense<0xFF800000> : vector<8xf32>
    %79 = vector.multi_reduction <maximumf>, %78, %cst_40 [1] : vector<8x8xf32> to vector<8xf32>
    %80 = vector.shape_cast %79 : vector<8xf32> to vector<8x1xf32>
    %81 = vector.broadcast %80 : vector<8x1xf32> to vector<8x8xf32>
    %82 = arith.subf %78, %81 : vector<8x8xf32>
    %83 = math.exp %82 : vector<8x8xf32>
    %cst_41 = arith.constant dense<0.000000e+00> : vector<8xf32>
    %84 = vector.multi_reduction <add>, %83, %cst_41 [1] : vector<8x8xf32> to vector<8xf32>
    %85 = vector.shape_cast %84 : vector<8xf32> to vector<8x1xf32>
    %86 = tpu.reciprocal %85 {approx = true} : vector<8x1xf32> -> vector<8x1xf32>
    %87 = vector.broadcast %86 : vector<8x1xf32> to vector<8x8xf32>
    %88 = arith.mulf %83, %87 : vector<8x8xf32>
    %89 = arith.truncf %88 : vector<8x8xf32> to vector<8x8xbf16>
    %cst_42 = arith.constant dense<0.000000e+00> : vector<8x8xf32>
    %90 = tpu.matmul %89, %77, %cst_42 {dimension_numbers = #tpu.dot_dimension_numbers<[1], [0], [0], [1], [0, 0, 1, 1], [], []>} : vector<8x8xbf16>, vector<8x8xbf16>, vector<8x8xf32> -> vector<8x8xf32>
    %91 = arith.truncf %90 : vector<8x8xf32> to vector<8x8xbf16>
    %92 = vector.extract_strided_slice %33 {offsets = [16, 0], sizes = [8, 32], strides = [1, 1]} : vector<32x32xbf16> to vector<8x32xbf16>
    %cst_43 = arith.constant dense<0.000000e+00> : vector<8x32xf32>
    %93 = tpu.matmul %91, %92, %cst_43 {dimension_numbers = #tpu.dot_dimension_numbers<[1], [0], [0], [1], [0, 0, 1, 1], [], []>} : vector<8x8xbf16>, vector<8x32xbf16>, vector<8x32xf32> -> vector<8x32xf32>
    %94 = arith.addf %74, %93 : vector<8x32xf32>
    %95 = vector.extract_strided_slice %30 {offsets = [0, 24], sizes = [8, 8], strides = [1, 1]} : vector<8x32xbf16> to vector<8x8xbf16>
    %96 = vector.extract_strided_slice %31 {offsets = [0, 24], sizes = [8, 8], strides = [1, 1]} : vector<8x32xbf16> to vector<8x8xbf16>
    %97 = vector.extract_strided_slice %32 {offsets = [0, 24], sizes = [8, 8], strides = [1, 1]} : vector<8x32xbf16> to vector<8x8xbf16>
    %cst_44 = arith.constant dense<0.000000e+00> : vector<8x8xf32>
    %98 = tpu.matmul %95, %96, %cst_44 {dimension_numbers = #tpu.dot_dimension_numbers<[1], [1], [0], [0], [0, 0, 1, 0], [], []>} : vector<8x8xbf16>, vector<8x8xbf16>, vector<8x8xf32> -> vector<8x8xf32>
    %cst_45 = arith.constant dense<0xFF800000> : vector<8xf32>
    %99 = vector.multi_reduction <maximumf>, %98, %cst_45 [1] : vector<8x8xf32> to vector<8xf32>
    %100 = vector.shape_cast %99 : vector<8xf32> to vector<8x1xf32>
    %101 = vector.broadcast %100 : vector<8x1xf32> to vector<8x8xf32>
    %102 = arith.subf %98, %101 : vector<8x8xf32>
    %103 = math.exp %102 : vector<8x8xf32>
    %cst_46 = arith.constant dense<0.000000e+00> : vector<8xf32>
    %104 = vector.multi_reduction <add>, %103, %cst_46 [1] : vector<8x8xf32> to vector<8xf32>
    %105 = vector.shape_cast %104 : vector<8xf32> to vector<8x1xf32>
    %106 = tpu.reciprocal %105 {approx = true} : vector<8x1xf32> -> vector<8x1xf32>
    %107 = vector.broadcast %106 : vector<8x1xf32> to vector<8x8xf32>
    %108 = arith.mulf %103, %107 : vector<8x8xf32>
    %109 = arith.truncf %108 : vector<8x8xf32> to vector<8x8xbf16>
    %cst_47 = arith.constant dense<0.000000e+00> : vector<8x8xf32>
    %110 = tpu.matmul %109, %97, %cst_47 {dimension_numbers = #tpu.dot_dimension_numbers<[1], [0], [0], [1], [0, 0, 1, 1], [], []>} : vector<8x8xbf16>, vector<8x8xbf16>, vector<8x8xf32> -> vector<8x8xf32>
    %111 = arith.truncf %110 : vector<8x8xf32> to vector<8x8xbf16>
    %112 = vector.extract_strided_slice %33 {offsets = [24, 0], sizes = [8, 32], strides = [1, 1]} : vector<32x32xbf16> to vector<8x32xbf16>
    %cst_48 = arith.constant dense<0.000000e+00> : vector<8x32xf32>
    %113 = tpu.matmul %111, %112, %cst_48 {dimension_numbers = #tpu.dot_dimension_numbers<[1], [0], [0], [1], [0, 0, 1, 1], [], []>} : vector<8x8xbf16>, vector<8x32xbf16>, vector<8x32xf32> -> vector<8x32xf32>
    %114 = arith.addf %94, %113 : vector<8x32xf32>
    %c0_49 = arith.constant 0 : index
    %c0_50 = arith.constant 0 : index
    %115 = vector.load %arg13[%c0_49, %c0_50] : memref<1x32xf32, #tpu.memory_space<vmem>>, vector<1x32xf32>
    %116 = vector.broadcast %115 : vector<1x32xf32> to vector<8x32xf32>
    %117 = arith.addf %114, %116 : vector<8x32xf32>
    %118 = arith.addf %1, %117 : vector<8x32xf32>
    %cst_51 = arith.constant dense<0.000000e+00> : vector<8xf32>
    %119 = vector.multi_reduction <add>, %118, %cst_51 [1] : vector<8x32xf32> to vector<8xf32>
    %120 = vector.shape_cast %119 : vector<8xf32> to vector<8x1xf32>
    %cst_52 = arith.constant 3.200000e+01 : f32
    %121 = vector.broadcast %cst_52 : f32 to vector<8x1xf32>
    %122 = arith.divf %120, %121 : vector<8x1xf32>
    %123 = vector.broadcast %122 : vector<8x1xf32> to vector<8x32xf32>
    %124 = arith.subf %118, %123 : vector<8x32xf32>
    %125 = arith.mulf %124, %124 : vector<8x32xf32>
    %cst_53 = arith.constant dense<0.000000e+00> : vector<8xf32>
    %126 = vector.multi_reduction <add>, %125, %cst_53 [1] : vector<8x32xf32> to vector<8xf32>
    %127 = vector.shape_cast %126 : vector<8xf32> to vector<8x1xf32>
    %cst_54 = arith.constant 3.200000e+01 : f32
    %128 = vector.broadcast %cst_54 : f32 to vector<8x1xf32>
    %129 = arith.divf %127, %128 : vector<8x1xf32>
    %cst_55 = arith.constant 9.99999974E-6 : f32
    %130 = vector.broadcast %cst_55 : f32 to vector<8x1xf32>
    %131 = arith.addf %129, %130 : vector<8x1xf32>
    %132 = math.rsqrt %131 : vector<8x1xf32>
    %133 = vector.broadcast %132 : vector<8x1xf32> to vector<8x32xf32>
    %134 = arith.mulf %124, %133 : vector<8x32xf32>
    %c0_56 = arith.constant 0 : index
    %c0_57 = arith.constant 0 : index
    %135 = vector.load %arg14[%c0_56, %c0_57] : memref<1x32xf32, #tpu.memory_space<vmem>>, vector<1x32xf32>
    %136 = vector.broadcast %135 : vector<1x32xf32> to vector<8x32xf32>
    %137 = arith.mulf %134, %136 : vector<8x32xf32>
    %c0_58 = arith.constant 0 : index
    %c0_59 = arith.constant 0 : index
    %138 = vector.load %arg15[%c0_58, %c0_59] : memref<1x32xf32, #tpu.memory_space<vmem>>, vector<1x32xf32>
    %139 = vector.broadcast %138 : vector<1x32xf32> to vector<8x32xf32>
    %140 = arith.addf %137, %139 : vector<8x32xf32>
    %c0_60 = arith.constant 0 : index
    %c0_61 = arith.constant 0 : index
    %c0_62 = arith.constant 0 : index
    %141 = vector.load %arg16[%c0_60, %c0_61, %c0_62] : memref<1x8x32xf32, #tpu.memory_space<vmem>>, vector<1x8x32xf32>
    %142 = vector.shape_cast %141 : vector<1x8x32xf32> to vector<8x32xf32>
    %143 = vector.shape_cast %140 : vector<8x32xf32> to vector<1x8x32xf32>
    tpu.vector_store %arg16[%c0_60, %c0_61, %c0_62], %143 {strides = array<i32>} : memref<1x8x32xf32, #tpu.memory_space<vmem>>, vector<1x8x32xf32>,
    return
  }
  func.func @transform_0(%arg0: i32, %arg1: i32) -> (i32, i32, i32) {
    %c0_i32 = arith.constant 0 : i32
    %c0_i32_0 = arith.constant 0 : i32
    return %arg0, %arg1, %c0_i32 : i32, i32, i32
  }
  func.func @transform_1(%arg0: i32, %arg1: i32) -> (i32, i32, i32) {
    %c0_i32 = arith.constant 0 : i32
    %c0_i32_0 = arith.constant 0 : i32
    return %arg0, %arg1, %c0_i32 : i32, i32, i32
  }
  func.func @transform_2(%arg0: i32, %arg1: i32) -> (i32, i32, i32) {
    %c0_i32 = arith.constant 0 : i32
    %c0_i32_0 = arith.constant 0 : i32
    %c0_i32_1 = arith.constant 0 : i32
    return %arg0, %c0_i32, %c0_i32_0 : i32, i32, i32
  }
  func.func @transform_3(%arg0: i32, %arg1: i32) -> (i32, i32, i32) {
    %c0_i32 = arith.constant 0 : i32
    %c0_i32_0 = arith.constant 0 : i32
    %c0_i32_1 = arith.constant 0 : i32
    return %arg0, %c0_i32, %c0_i32_0 : i32, i32, i32
  }
  func.func @transform_4(%arg0: i32, %arg1: i32) -> (i32, i32) {
    %c0_i32 = arith.constant 0 : i32
    %c0_i32_0 = arith.constant 0 : i32
    %c0_i32_1 = arith.constant 0 : i32
    return %c0_i32, %c0_i32_0 : i32, i32
  }
  func.func @transform_5(%arg0: i32, %arg1: i32) -> (i32, i32) {
    %c0_i32 = arith.constant 0 : i32
    %c0_i32_0 = arith.constant 0 : i32
    %c0_i32_1 = arith.constant 0 : i32
    return %c0_i32, %c0_i32_0 : i32, i32
  }
  func.func @transform_6(%arg0: i32, %arg1: i32) -> (i32, i32) {
    %c0_i32 = arith.constant 0 : i32
    %c0_i32_0 = arith.constant 0 : i32
    %c0_i32_1 = arith.constant 0 : i32
    return %c0_i32, %c0_i32_0 : i32, i32
  }
  func.func @transform_7(%arg0: i32, %arg1: i32) -> (i32, i32) {
    %c0_i32 = arith.constant 0 : i32
    %c0_i32_0 = arith.constant 0 : i32
    %c0_i32_1 = arith.constant 0 : i32
    return %c0_i32, %c0_i32_0 : i32, i32
  }
  func.func @transform_8(%arg0: i32, %arg1: i32) -> (i32, i32) {
    %c0_i32 = arith.constant 0 : i32
    %c0_i32_0 = arith.constant 0 : i32
    %c0_i32_1 = arith.constant 0 : i32
    return %c0_i32, %c0_i32_0 : i32, i32
  }
  func.func @transform_9(%arg0: i32, %arg1: i32) -> (i32, i32) {
    %c0_i32 = arith.constant 0 : i32
    %c0_i32_0 = arith.constant 0 : i32
    %c0_i32_1 = arith.constant 0 : i32
    return %c0_i32, %c0_i32_0 : i32, i32
  }
  func.func @transform_10(%arg0: i32, %arg1: i32) -> (i32, i32) {
    %c0_i32 = arith.constant 0 : i32
    %c0_i32_0 = arith.constant 0 : i32
    %c0_i32_1 = arith.constant 0 : i32
    return %c0_i32, %c0_i32_0 : i32, i32
  }
  func.func @transform_11(%arg0: i32, %arg1: i32) -> (i32, i32) {
    %c0_i32 = arith.constant 0 : i32
    %c0_i32_0 = arith.constant 0 : i32
    %c0_i32_1 = arith.constant 0 : i32
    return %c0_i32, %c0_i32_0 : i32, i32
  }
  func.func @transform_12(%arg0: i32, %arg1: i32) -> (i32, i32) {
    %c0_i32 = arith.constant 0 : i32
    %c0_i32_0 = arith.constant 0 : i32
    %c0_i32_1 = arith.constant 0 : i32
    return %c0_i32, %c0_i32_0 : i32, i32
  }
  func.func @transform_13(%arg0: i32, %arg1: i32) -> (i32, i32) {
    %c0_i32 = arith.constant 0 : i32
    %c0_i32_0 = arith.constant 0 : i32
    %c0_i32_1 = arith.constant 0 : i32
    return %c0_i32, %c0_i32_0 : i32, i32
  }
  func.func @transform_14(%arg0: i32, %arg1: i32) -> (i32, i32, i32) {
    %c0_i32 = arith.constant 0 : i32
    %c0_i32_0 = arith.constant 0 : i32
    return %arg0, %arg1, %c0_i32 : i32, i32, i32
  }
}

</mosaic_0001>

<llo_original>
// kernel: tpu_custom_call.1
$region0: #{tpu_custom_call.1}
  #allocation0 [shape = 'u32[]', space=smem, size = 0x4, offset = 0x4, fixed_abs, tag = 'smem constant byte address 0x4 - core index']
  #allocation1 [shape = 'u32[144,128]{1,0:T(1,128)}', space=vmem, size = 0x12000, scoped, tag = 'internal scratch']
  %s0 = inlined_call_operand.hbm [shape: f32[2,8,32], index: 0, kind: input, shape index: {}]
  %s1 = inlined_call_operand.hbm [shape: f32[2,8,32], index: 1, kind: input, shape index: {}]
  %s2 = inlined_call_operand.hbm [shape: f32[2,8,32], index: 2, kind: input, shape index: {}]
  %s3 = inlined_call_operand.hbm [shape: f32[2,8,32], index: 3, kind: input, shape index: {}]
  %s4 = inlined_call_operand.hbm [shape: bf16[32,32], index: 4, kind: input, shape index: {}]
  %s5 = inlined_call_operand.vmem [shape: f32[1,32], index: 5, kind: input, shape index: {}]
  %s6 = inlined_call_operand.hbm [shape: bf16[32,32], index: 6, kind: input, shape index: {}]
  %s7 = inlined_call_operand.vmem [shape: f32[1,32], index: 7, kind: input, shape index: {}]
  %s8 = inlined_call_operand.hbm [shape: bf16[32,32], index: 8, kind: input, shape index: {}]
  %s9 = inlined_call_operand.hbm [shape: f32[1,32], index: 9, kind: input, shape index: {}]
  %s10 = inlined_call_operand.vmem [shape: bf16[32,32], index: 10, kind: input, shape index: {}]
  %s11 = inlined_call_operand.vmem [shape: f32[1,32], index: 11, kind: input, shape index: {}]
  %s12 = inlined_call_operand.vmem [shape: f32[1,32], index: 12, kind: input, shape index: {}]
  %s13 = inlined_call_operand.vmem [shape: f32[1,32], index: 13, kind: input, shape index: {}]
  %s14 = inlined_call_operand.hbm [shape: f32[2,8,32], index: 14, kind: output, shape index: {}]
  %s15 = sld [smem:[#allocation0]]
  $region121: #{tpu_custom_call.1} parent=0
    _
  %s17 = ssub.s32 1, %s15
  %s18 = scalar_select 0, %s17, %s15
  $region1: #{tpu_custom_call.1} parent=0
    #allocation2 [shape = 'u8[8192]{0}', space=vmem, size = 0x2000, scoped, tag = 'input window, operand 0']
    #allocation3 [shape = 's32[2]{0}', space=sflag, size = 0x8, scoped, tag = 'scoped memory for tpu_custom_call.1']
    #allocation4 [shape = 's32[2]{0}', space=sflag, size = 0x8, scoped, tag = 'scoped memory for tpu_custom_call.1']
    #allocation5 [shape = 'u8[8192]{0}', space=vmem, size = 0x2000, scoped, tag = 'input window, operand 1']
    #allocation6 [shape = 's32[2]{0}', space=sflag, size = 0x8, scoped, tag = 'scoped memory for tpu_custom_call.1']
    #allocation7 [shape = 'u8[8192]{0}', space=vmem, size = 0x2000, scoped, tag = 'input window, operand 2']
    #allocation8 [shape = 'u8[8192]{0}', space=vmem, size = 0x2000, scoped, tag = 'input window, operand 3']
    #allocation9 [shape = 's32[2]{0}', space=sflag, size = 0x8, scoped, tag = 'scoped memory for tpu_custom_call.1']
    #allocation10 [shape = 'u8[8192]{0}', space=vmem, size = 0x2000, scoped, tag = 'input window, operand 4, single buffered']
    #allocation11 [shape = 'u8[8192]{0}', space=vmem, size = 0x2000, scoped, tag = 'input window, operand 6, single buffered']
    #allocation12 [shape = 's32[1]{0}', space=sflag, size = 0x4, scoped, tag = 'scoped memory for tpu_custom_call.1']
    #allocation13 [shape = 'u8[8192]{0}', space=vmem, size = 0x2000, scoped, tag = 'input window, operand 8, single buffered']
    #allocation14 [shape = 'u8[512]{0}', space=vmem, size = 0x400, scoped, tag = 'input window, operand 9, single buffered']
    #allocation15 [shape = 's32[1]{0}', space=sflag, size = 0x4, scoped, tag = 'scoped memory for tpu_custom_call.1']
    #allocation16 [shape = 'u8[8192]{0}', space=vmem, size = 0x2000, scoped, tag = 'output window, operand 0']
    %19 = vsyncpa [#allocation3], 0
    %s20 = scalar_lea.sflag [#allocation3], 1
    %21 = vsyncpa %s20, 0
    %22 = vsyncpa [#allocation6], 0
    %s23 = scalar_lea.sflag [#allocation6], 1
    %24 = vsyncpa %s23, 0
    %25 = vsyncpa [#allocation9], 0
    %s26 = scalar_lea.sflag [#allocation9], 1
    %27 = vsyncpa %s26, 0
    %28 = vsyncpa [#allocation12], 0
    %29 = vsyncpa [#allocation15], 0
    %30 = vsyncpa [#allocation4], 0
    %s31 = scalar_lea.sflag [#allocation4], 1
    %32 = vsyncpa %s31, 0
    loop: start=0, step=1, limit=4
    $region2: #{tpu_custom_call.1} parent=1 // loop_pre_header
      _
    $region3: #{tpu_custom_call.1} parent=1 // loop_header
      %s34 = sphi 0, %s38
      %p35 = scmp.ge.s32.totalorder %s34, 4
      %s41 = sphi 0, %s53
      %s42 = sphi 0, %s49
      %s43 = sphi 0, %s41
      %s44 = sphi 0, %s42
      %s45 = sphi 0, %s43
      %s46 = sphi 0, %s44
      %s58 = sphi 0, %s60
      %s61 = sphi 0, %s58
      %s62 = sphi 0, %s61
      %s78 = sphi 0, %s62
      %s86 = sphi 0, %s88
      %s89 = sphi 0, %s86
      %s90 = sphi 0, %s89
      %s106 = sphi 0, %s90
      %s112 = sphi 0, %s114
      %s115 = sphi 0, %s112
      %s116 = sphi 0, %s115
      %s132 = sphi 0, %s116
      %s138 = sphi 0, %s140
      %s141 = sphi 0, %s138
      %s142 = sphi 0, %s141
      %s158 = sphi 0, %s142
      %s162 = sphi 0, %s162
      %s164 = sphi 0, %s162
      %s165 = sphi 0, %s164
      %s179 = sphi 0, %s165
      %s183 = sphi 0, %s183
      %s185 = sphi 0, %s183
      %s186 = sphi 0, %s185
      %s200 = sphi 0, %s186
      %s204 = sphi 0, %s204
      %s206 = sphi 0, %s204
      %s207 = sphi 0, %s206
      %s221 = sphi 0, %s207
      %s225 = sphi 0, %s225
      %s227 = sphi 0, %s225
      %s228 = sphi 0, %s227
      %s242 = sphi 0, %s228
      %s246 = sphi 0, %s246
      %s248 = sphi 0, %s246
      %s249 = sphi 0, %s248
      %s263 = sphi 0, %s249
      %s267 = sphi 0, %s267
      %s269 = sphi 0, %s267
      %s270 = sphi 0, %s269
      %s284 = sphi 0, %s270
      %s288 = sphi 0, %s288
      %s290 = sphi 0, %s288
      %s291 = sphi 0, %s290
      %s305 = sphi 0, %s291
      %s309 = sphi 0, %s309
      %s311 = sphi 0, %s309
      %s312 = sphi 0, %s311
      %s326 = sphi 0, %s312
      %s330 = sphi 0, %s330
      %s332 = sphi 0, %s330
      %s333 = sphi 0, %s332
      %s347 = sphi 0, %s333
      %s351 = sphi 0, %s351
      %s353 = sphi 0, %s351
      %s354 = sphi 0, %s353
      %s368 = sphi 0, %s354
      %s376 = sphi 0, %s378
      %s379 = sphi 0, %s376
      %s380 = sphi 0, %s379
      %s396 = sphi 0, %s380
    $region4: #{tpu_custom_call.1} parent=1 // loop_header_branch
      %37 = sbr.rel (%p35) target = $region8
    $region5: #{tpu_custom_call.1} parent=1 // loop_body
      %s39 = ssub.s32 %s34, 1
      %s40 = ssub.s32 %s34, 2
      %s47 = sadd.s32 1, %s42
      %p48 = scmp.ge.s32.totalorder %s47, 1
      %s49 = scalar_select %p48, 0, %s47
      %s50 = sadd.s32 1, %s41
      %s51 = scalar_select %p48, %s50, %s41
      %p52 = scmp.ge.s32.totalorder %s51, 2
      %s53 = scalar_select %p52, 0, %s51
      %s54 = ssub.s32 %s41, %s53
      %s55 = ssub.s32 %s42, %s49
      %s56 = sor.u32 %s54, %s55
      %p57 = scmp.eq.s32.totalorder %s56, 0
      %s59 = sadd.s32 %s58, 1
      %s60 = scalar_select %p57, %s58, %s59
      %p63 = pneg %p57
      %p64 = scmp.eq.s32.totalorder %s34, 1
      %p65 = por %p63, %p64
      %p66 = scmp.ne.s32.totalorder %s58, %s61
      %p67 = scmp.eq.s32.totalorder %s34, 0
      %p68 = por %p66, %p67
      %p69 = scmp.ne.s32.totalorder %s58, %s61
      %p70 = scmp.eq.s32.totalorder %s39, 1
      %p71 = por %p69, %p70
      %p72 = scmp.ne.s32.totalorder %s61, %s62
      %p73 = scmp.eq.s32.totalorder %s39, 0
      %p74 = por %p72, %p73
      %p75 = scmp.ne.s32.totalorder %s61, %s62
      %p76 = scmp.eq.s32.totalorder %s40, 1
      %p77 = por %p75, %p76
      %p79 = scmp.ne.s32.totalorder %s62, %s78
      %p80 = scmp.eq.s32.totalorder %s40, 0
      %p81 = por %p79, %p80
      %s82 = ssub.s32 %s41, %s53
      %s83 = ssub.s32 %s42, %s49
      %s84 = sor.u32 %s82, %s83
      %p85 = scmp.eq.s32.totalorder %s84, 0
      %s87 = sadd.s32 %s86, 1
      %s88 = scalar_select %p85, %s86, %s87
      %p91 = pneg %p85
      %p92 = scmp.eq.s32.totalorder %s34, 1
      %p93 = por %p91, %p92
      %p94 = scmp.ne.s32.totalorder %s86, %s89
      %p95 = scmp.eq.s32.totalorder %s34, 0
      %p96 = por %p94, %p95
      %p97 = scmp.ne.s32.totalorder %s86, %s89
      %p98 = scmp.eq.s32.totalorder %s39, 1
      %p99 = por %p97, %p98
      %p100 = scmp.ne.s32.totalorder %s89, %s90
      %p101 = scmp.eq.s32.totalorder %s39, 0
      %p102 = por %p100, %p101
      %p103 = scmp.ne.s32.totalorder %s89, %s90
      %p104 = scmp.eq.s32.totalorder %s40, 1
      %p105 = por %p103, %p104
      %p107 = scmp.ne.s32.totalorder %s90, %s106
      %p108 = scmp.eq.s32.totalorder %s40, 0
      %p109 = por %p107, %p108
      %s110 = ssub.s32 %s41, %s53
      %p111 = scmp.eq.s32.totalorder %s110, 0
      %s113 = sadd.s32 %s112, 1
      %s114 = scalar_select %p111, %s112, %s113
      %p117 = pneg %p111
      %p118 = scmp.eq.s32.totalorder %s34, 1
      %p119 = por %p117, %p118
      %p120 = scmp.ne.s32.totalorder %s112, %s115
      %p121 = scmp.eq.s32.totalorder %s34, 0
      %p122 = por %p120, %p121
      %p123 = scmp.ne.s32.totalorder %s112, %s115
      %p124 = scmp.eq.s32.totalorder %s39, 1
      %p125 = por %p123, %p124
      %p126 = scmp.ne.s32.totalorder %s115, %s116
      %p127 = scmp.eq.s32.totalorder %s39, 0
      %p128 = por %p126, %p127
      %p129 = scmp.ne.s32.totalorder %s115, %s116
      %p130 = scmp.eq.s32.totalorder %s40, 1
      %p131 = por %p129, %p130
      %p133 = scmp.ne.s32.totalorder %s116, %s132
      %p134 = scmp.eq.s32.totalorder %s40, 0
      %p135 = por %p133, %p134
      %s136 = ssub.s32 %s41, %s53
      %p137 = scmp.eq.s32.totalorder %s136, 0
      %s139 = sadd.s32 %s138, 1
      %s140 = scalar_select %p137, %s138, %s139
      %p143 = pneg %p137
      %p144 = scmp.eq.s32.totalorder %s34, 1
      %p145 = por %p143, %p144
      %p146 = scmp.ne.s32.totalorder %s138, %s141
      %p147 = scmp.eq.s32.totalorder %s34, 0
      %p148 = por %p146, %p147
      %p149 = scmp.ne.s32.totalorder %s138, %s141
      %p150 = scmp.eq.s32.totalorder %s39, 1
      %p151 = por %p149, %p150
      %p152 = scmp.ne.s32.totalorder %s141, %s142
      %p153 = scmp.eq.s32.totalorder %s39, 0
      %p154 = por %p152, %p153
      %p155 = scmp.ne.s32.totalorder %s141, %s142
      %p156 = scmp.eq.s32.totalorder %s40, 1
      %p157 = por %p155, %p156
      %p159 = scmp.ne.s32.totalorder %s142, %s158
      %p160 = scmp.eq.s32.totalorder %s40, 0
      %p161 = por %p159, %p160
      %s163 = sadd.s32 %s162, 1
      %p166 = scmp.eq.s32.totalorder %s34, 1
      %p167 = scmp.ne.s32.totalorder %s162, %s164
      %p168 = scmp.eq.s32.totalorder %s34, 0
      %p169 = por %p167, %p168
      %p170 = scmp.ne.s32.totalorder %s162, %s164
      %p171 = scmp.eq.s32.totalorder %s39, 1
      %p172 = por %p170, %p171
      %p173 = scmp.ne.s32.totalorder %s164, %s165
      %p174 = scmp.eq.s32.totalorder %s39, 0
      %p175 = por %p173, %p174
      %p176 = scmp.ne.s32.totalorder %s164, %s165
      %p177 = scmp.eq.s32.totalorder %s40, 1
      %p178 = por %p176, %p177
      %p180 = scmp.ne.s32.totalorder %s165, %s179
      %p181 = scmp.eq.s32.totalorder %s40, 0
      %p182 = por %p180, %p181
      %s184 = sadd.s32 %s183, 1
      %p187 = scmp.eq.s32.totalorder %s34, 1
      %p188 = scmp.ne.s32.totalorder %s183, %s185
      %p189 = scmp.eq.s32.totalorder %s34, 0
      %p190 = por %p188, %p189
      %p191 = scmp.ne.s32.totalorder %s183, %s185
      %p192 = scmp.eq.s32.totalorder %s39, 1
      %p193 = por %p191, %p192
      %p194 = scmp.ne.s32.totalorder %s185, %s186
      %p195 = scmp.eq.s32.totalorder %s39, 0
      %p196 = por %p194, %p195
      %p197 = scmp.ne.s32.totalorder %s185, %s186
      %p198 = scmp.eq.s32.totalorder %s40, 1
      %p199 = por %p197, %p198
      %p201 = scmp.ne.s32.totalorder %s186, %s200
      %p202 = scmp.eq.s32.totalorder %s40, 0
      %p203 = por %p201, %p202
      %s205 = sadd.s32 %s204, 1
      %p208 = scmp.eq.s32.totalorder %s34, 1
      %p209 = scmp.ne.s32.totalorder %s204, %s206
      %p210 = scmp.eq.s32.totalorder %s34, 0
      %p211 = por %p209, %p210
      %p212 = scmp.ne.s32.totalorder %s204, %s206
      %p213 = scmp.eq.s32.totalorder %s39, 1
      %p214 = por %p212, %p213
      %p215 = scmp.ne.s32.totalorder %s206, %s207
      %p216 = scmp.eq.s32.totalorder %s39, 0
      %p217 = por %p215, %p216
      %p218 = scmp.ne.s32.totalorder %s206, %s207
      %p219 = scmp.eq.s32.totalorder %s40, 1
      %p220 = por %p218, %p219
      %p222 = scmp.ne.s32.totalorder %s207, %s221
      %p223 = scmp.eq.s32.totalorder %s40, 0
      %p224 = por %p222, %p223
      %s226 = sadd.s32 %s225, 1
      %p229 = scmp.eq.s32.totalorder %s34, 1
      %p230 = scmp.ne.s32.totalorder %s225, %s227
      %p231 = scmp.eq.s32.totalorder %s34, 0
      %p232 = por %p230, %p231
      %p233 = scmp.ne.s32.totalorder %s225, %s227
      %p234 = scmp.eq.s32.totalorder %s39, 1
      %p235 = por %p233, %p234
      %p236 = scmp.ne.s32.totalorder %s227, %s228
      %p237 = scmp.eq.s32.totalorder %s39, 0
      %p238 = por %p236, %p237
      %p239 = scmp.ne.s32.totalorder %s227, %s228
      %p240 = scmp.eq.s32.totalorder %s40, 1
      %p241 = por %p239, %p240
      %p243 = scmp.ne.s32.totalorder %s228, %s242
      %p244 = scmp.eq.s32.totalorder %s40, 0
      %p245 = por %p243, %p244
      %s247 = sadd.s32 %s246, 1
      %p250 = scmp.eq.s32.totalorder %s34, 1
      %p251 = scmp.ne.s32.totalorder %s246, %s248
      %p252 = scmp.eq.s32.totalorder %s34, 0
      %p253 = por %p251, %p252
      %p254 = scmp.ne.s32.totalorder %s246, %s248
      %p255 = scmp.eq.s32.totalorder %s39, 1
      %p256 = por %p254, %p255
      %p257 = scmp.ne.s32.totalorder %s248, %s249
      %p258 = scmp.eq.s32.totalorder %s39, 0
      %p259 = por %p257, %p258
      %p260 = scmp.ne.s32.totalorder %s248, %s249
      %p261 = scmp.eq.s32.totalorder %s40, 1
      %p262 = por %p260, %p261
      %p264 = scmp.ne.s32.totalorder %s249, %s263
      %p265 = scmp.eq.s32.totalorder %s40, 0
      %p266 = por %p264, %p265
      %s268 = sadd.s32 %s267, 1
      %p271 = scmp.eq.s32.totalorder %s34, 1
      %p272 = scmp.ne.s32.totalorder %s267, %s269
      %p273 = scmp.eq.s32.totalorder %s34, 0
      %p274 = por %p272, %p273
      %p275 = scmp.ne.s32.totalorder %s267, %s269
      %p276 = scmp.eq.s32.totalorder %s39, 1
      %p277 = por %p275, %p276
      %p278 = scmp.ne.s32.totalorder %s269, %s270
      %p279 = scmp.eq.s32.totalorder %s39, 0
      %p280 = por %p278, %p279
      %p281 = scmp.ne.s32.totalorder %s269, %s270
      %p282 = scmp.eq.s32.totalorder %s40, 1
      %p283 = por %p281, %p282
      %p285 = scmp.ne.s32.totalorder %s270, %s284
      %p286 = scmp.eq.s32.totalorder %s40, 0
      %p287 = por %p285, %p286
      %s289 = sadd.s32 %s288, 1
      %p292 = scmp.eq.s32.totalorder %s34, 1
      %p293 = scmp.ne.s32.totalorder %s288, %s290
      %p294 = scmp.eq.s32.totalorder %s34, 0
      %p295 = por %p293, %p294
      %p296 = scmp.ne.s32.totalorder %s288, %s290
      %p297 = scmp.eq.s32.totalorder %s39, 1
      %p298 = por %p296, %p297
      %p299 = scmp.ne.s32.totalorder %s290, %s291
      %p300 = scmp.eq.s32.totalorder %s39, 0
      %p301 = por %p299, %p300
      %p302 = scmp.ne.s32.totalorder %s290, %s291
      %p303 = scmp.eq.s32.totalorder %s40, 1
      %p304 = por %p302, %p303
      %p306 = scmp.ne.s32.totalorder %s291, %s305
      %p307 = scmp.eq.s32.totalorder %s40, 0
      %p308 = por %p306, %p307
      %s310 = sadd.s32 %s309, 1
      %p313 = scmp.eq.s32.totalorder %s34, 1
      %p314 = scmp.ne.s32.totalorder %s309, %s311
      %p315 = scmp.eq.s32.totalorder %s34, 0
      %p316 = por %p314, %p315
      %p317 = scmp.ne.s32.totalorder %s309, %s311
      %p318 = scmp.eq.s32.totalorder %s39, 1
      %p319 = por %p317, %p318
      %p320 = scmp.ne.s32.totalorder %s311, %s312
      %p321 = scmp.eq.s32.totalorder %s39, 0
      %p322 = por %p320, %p321
      %p323 = scmp.ne.s32.totalorder %s311, %s312
      %p324 = scmp.eq.s32.totalorder %s40, 1
      %p325 = por %p323, %p324
      %p327 = scmp.ne.s32.totalorder %s312, %s326
      %p328 = scmp.eq.s32.totalorder %s40, 0
      %p329 = por %p327, %p328
      %s331 = sadd.s32 %s330, 1
      %p334 = scmp.eq.s32.totalorder %s34, 1
      %p335 = scmp.ne.s32.totalorder %s330, %s332
      %p336 = scmp.eq.s32.totalorder %s34, 0
      %p337 = por %p335, %p336
      %p338 = scmp.ne.s32.totalorder %s330, %s332
      %p339 = scmp.eq.s32.totalorder %s39, 1
      %p340 = por %p338, %p339
      %p341 = scmp.ne.s32.totalorder %s332, %s333
      %p342 = scmp.eq.s32.totalorder %s39, 0
      %p343 = por %p341, %p342
      %p344 = scmp.ne.s32.totalorder %s332, %s333
      %p345 = scmp.eq.s32.totalorder %s40, 1
      %p346 = por %p344, %p345
      %p348 = scmp.ne.s32.totalorder %s333, %s347
      %p349 = scmp.eq.s32.totalorder %s40, 0
      %p350 = por %p348, %p349
      %s352 = sadd.s32 %s351, 1
      %p355 = scmp.eq.s32.totalorder %s34, 1
      %p356 = scmp.ne.s32.totalorder %s351, %s353
      %p357 = scmp.eq.s32.totalorder %s34, 0
      %p358 = por %p356, %p357
      %p359 = scmp.ne.s32.totalorder %s351, %s353
      %p360 = scmp.eq.s32.totalorder %s39, 1
      %p361 = por %p359, %p360
      %p362 = scmp.ne.s32.totalorder %s353, %s354
      %p363 = scmp.eq.s32.totalorder %s39, 0
      %p364 = por %p362, %p363
      %p365 = scmp.ne.s32.totalorder %s353, %s354
      %p366 = scmp.eq.s32.totalorder %s40, 1
      %p367 = por %p365, %p366
      %p369 = scmp.ne.s32.totalorder %s354, %s368
      %p370 = scmp.eq.s32.totalorder %s40, 0
      %p371 = por %p369, %p370
      %s372 = ssub.s32 %s41, %s53
      %s373 = ssub.s32 %s42, %s49
      %s374 = sor.u32 %s372, %s373
      %p375 = scmp.eq.s32.totalorder %s374, 0
      %s377 = sadd.s32 %s376, 1
      %s378 = scalar_select %p375, %s376, %s377
      %p381 = pneg %p375
      %p382 = scmp.eq.s32.totalorder %s34, 1
      %p383 = por %p381, %p382
      %p384 = scmp.ne.s32.totalorder %s376, %s379
      %p385 = scmp.eq.s32.totalorder %s34, 0
      %p386 = por %p384, %p385
      %p387 = scmp.ne.s32.totalorder %s376, %s379
      %p388 = scmp.eq.s32.totalorder %s39, 1
      %p389 = por %p387, %p388
      %p390 = scmp.ne.s32.totalorder %s379, %s380
      %p391 = scmp.eq.s32.totalorder %s39, 0
      %p392 = por %p390, %p391
      %p393 = scmp.ne.s32.totalorder %s379, %s380
      %p394 = scmp.eq.s32.totalorder %s40, 1
      %p395 = por %p393, %p394
      %p397 = scmp.ne.s32.totalorder %s380, %s396
      %p398 = scmp.eq.s32.totalorder %s40, 0
      %p399 = por %p397, %p398
      %p400 = scmp.le.s32.totalorder 1, %s34
      %p401 = scmp.lt.s32.totalorder %s34, 3
      %p402 = pnand %p400, %p401
      %p403 = pneg %p402
      // Predicated region
      $region9: #{tpu_custom_call.1} parent=5 // pred_check
        _
      $region10: #{tpu_custom_call.1} parent=5 // pred_check_branch
        %405 = sbr.rel (%p402) target = $region12
      $region11: #{tpu_custom_call.1} parent=5 // pred_region
        %s406 = ssub.s32 %s34, 1
        // Predicated region
        $region13: #{tpu_custom_call.1} parent=11 // pred_check
          %p407 = pneg %p175
        $region14: #{tpu_custom_call.1} parent=11 // pred_check_branch
          %409 = sbr.rel (%p407) target = $region16
        $region15: #{tpu_custom_call.1} parent=11 // pred_region
          %s411 = ssub.s32 256, 256
          %412 = vsyncadd [#allocation9], %s411
          %s413 = sshll.u32 [#allocation10], 4
          %s414 = int_to_ptr.vmem [resolvable:$true] %s413
          %419 = dma.hbm_to_vmem [thread:$0]  %s4, 256, %s414, [#allocation9], 64, 64, 4
        $region16: #{tpu_custom_call.1} parent=11 // pred_fallthru
          _
        // Predicated region
        $region17: #{tpu_custom_call.1} parent=11 // pred_check
          %p420 = pneg %p196
        $region18: #{tpu_custom_call.1} parent=11 // pred_check_branch
          %422 = sbr.rel (%p420) target = $region20
        $region19: #{tpu_custom_call.1} parent=11 // pred_region
          _
        $region20: #{tpu_custom_call.1} parent=11 // pred_fallthru
          _
        // Predicated region
        $region21: #{tpu_custom_call.1} parent=11 // pred_check
          %p423 = pneg %p217
        $region22: #{tpu_custom_call.1} parent=11 // pred_check_branch
          %425 = sbr.rel (%p423) target = $region24
        $region23: #{tpu_custom_call.1} parent=11 // pred_region
          %s427 = ssub.s32 256, 256
          %428 = vsyncadd [#allocation12], %s427
          %s429 = sshll.u32 [#allocation11], 4
          %s430 = int_to_ptr.vmem [resolvable:$true] %s429
          %435 = dma.hbm_to_vmem [thread:$0]  %s6, 256, %s430, [#allocation12], 64, 64, 4
        $region24: #{tpu_custom_call.1} parent=11 // pred_fallthru
          _
        // Predicated region
        $region25: #{tpu_custom_call.1} parent=11 // pred_check
          %p436 = pneg %p238
        $region26: #{tpu_custom_call.1} parent=11 // pred_check_branch
          %438 = sbr.rel (%p436) target = $region28
        $region27: #{tpu_custom_call.1} parent=11 // pred_region
          _
        $region28: #{tpu_custom_call.1} parent=11 // pred_fallthru
          _
        // Predicated region
        $region29: #{tpu_custom_call.1} parent=11 // pred_check
          %p439 = pneg %p259
        $region30: #{tpu_custom_call.1} parent=11 // pred_check_branch
          %441 = sbr.rel (%p439) target = $region32
        $region31: #{tpu_custom_call.1} parent=11 // pred_region
          %s443 = ssub.s32 256, 256
          %444 = vsyncadd [#allocation12], %s443
          %s445 = sshll.u32 [#allocation13], 4
          %s446 = int_to_ptr.vmem [resolvable:$true] %s445
          %451 = dma.hbm_to_vmem [thread:$0]  %s8, 256, %s446, [#allocation12], 64, 64, 4
        $region32: #{tpu_custom_call.1} parent=11 // pred_fallthru
          _
        // Predicated region
        $region33: #{tpu_custom_call.1} parent=11 // pred_check
          %p452 = pneg %p280
        $region34: #{tpu_custom_call.1} parent=11 // pred_check_branch
          %454 = sbr.rel (%p452) target = $region36
        $region35: #{tpu_custom_call.1} parent=11 // pred_region
          %s456 = ssub.s32 16, 16
          %457 = vsyncadd [#allocation15], %s456
          %s459 = sshll.u32 [#allocation14], 4
          %s460 = int_to_ptr.vmem [resolvable:$true] %s459
          %462 = dma.hbm_to_vmem [thread:$0]  %s9, 16, %s460, [#allocation15]
        $region36: #{tpu_custom_call.1} parent=11 // pred_fallthru
          _
        // Predicated region
        $region37: #{tpu_custom_call.1} parent=11 // pred_check
          %p463 = pneg %p301
        $region38: #{tpu_custom_call.1} parent=11 // pred_check_branch
          %465 = sbr.rel (%p463) target = $region40
        $region39: #{tpu_custom_call.1} parent=11 // pred_region
          _
        $region40: #{tpu_custom_call.1} parent=11 // pred_fallthru
          _
        // Predicated region
        $region41: #{tpu_custom_call.1} parent=11 // pred_check
          %p466 = pneg %p322
        $region42: #{tpu_custom_call.1} parent=11 // pred_check_branch
          %468 = sbr.rel (%p466) target = $region44
        $region43: #{tpu_custom_call.1} parent=11 // pred_region
          _
        $region44: #{tpu_custom_call.1} parent=11 // pred_fallthru
          _
        // Predicated region
        $region45: #{tpu_custom_call.1} parent=11 // pred_check
          %p469 = pneg %p343
        $region46: #{tpu_custom_call.1} parent=11 // pred_check_branch
          %471 = sbr.rel (%p469) target = $region48
        $region47: #{tpu_custom_call.1} parent=11 // pred_region
          _
        $region48: #{tpu_custom_call.1} parent=11 // pred_fallthru
          _
        // Predicated region
        $region49: #{tpu_custom_call.1} parent=11 // pred_check
          %p472 = pneg %p364
        $region50: #{tpu_custom_call.1} parent=11 // pred_check_branch
          %474 = sbr.rel (%p472) target = $region52
        $region51: #{tpu_custom_call.1} parent=11 // pred_region
          _
        $region52: #{tpu_custom_call.1} parent=11 // pred_fallthru
          _
      $region12: #{tpu_custom_call.1} parent=5 // pred_fallthru
        _
      %p475 = scmp.lt.s32.totalorder %s34, 2
      // Predicated region
      $region53: #{tpu_custom_call.1} parent=5 // pred_check
        %p476 = pneg %p475
      $region54: #{tpu_custom_call.1} parent=5 // pred_check_branch
        %478 = sbr.rel (%p476) target = $region56
      $region55: #{tpu_custom_call.1} parent=5 // pred_region
        // Predicated region
        $region57: #{tpu_custom_call.1} parent=55 // pred_check
          %p479 = pneg %p68
        $region58: #{tpu_custom_call.1} parent=55 // pred_check_branch
          %481 = sbr.rel (%p479) target = $region60
        $region59: #{tpu_custom_call.1} parent=55 // pred_region
          %s482 = sand.u32 %s58, 1
          %s483 = scalar_lea.sflag [#allocation3], %s482
          %s484 = sand.u32 %s58, 1
          %s485 = smul.addr %s484, 8
          %s486 = scalar_lea.vmem [#allocation2], %s485
          %s488 = ssub.s32 128, 128
          %489 = vsyncadd %s483, %s488
          %s490 = sadd.s32 %s42, %s41
          %s491 = smul.addr %s490, 128
          %s492 = scalar_lea.hbm %s0, %s491
          %s494 = sshll.u32 %s486, 4
          %s495 = int_to_ptr.vmem [resolvable:$true] %s494
          %497 = dma.hbm_to_vmem [thread:$0]  %s492, 128, %s495, %s483
        $region60: #{tpu_custom_call.1} parent=55 // pred_fallthru
          _
        // Predicated region
        $region61: #{tpu_custom_call.1} parent=55 // pred_check
          %p498 = pneg %p96
        $region62: #{tpu_custom_call.1} parent=55 // pred_check_branch
          %500 = sbr.rel (%p498) target = $region64
        $region63: #{tpu_custom_call.1} parent=55 // pred_region
          %s501 = sand.u32 %s34, 1
          %s502 = scalar_lea.sflag [#allocation6], %s501
          %s503 = sand.u32 %s86, 1
          %s504 = smul.addr %s503, 8
          %s505 = scalar_lea.vmem [#allocation5], %s504
          %s507 = ssub.s32 128, 128
          %508 = vsyncadd %s502, %s507
          %s509 = sadd.s32 %s42, %s41
          %s510 = smul.addr %s509, 128
          %s511 = scalar_lea.hbm %s1, %s510
          %s513 = sshll.u32 %s505, 4
          %s514 = int_to_ptr.vmem [resolvable:$true] %s513
          %516 = dma.hbm_to_vmem [thread:$0]  %s511, 128, %s514, %s502
        $region64: #{tpu_custom_call.1} parent=55 // pred_fallthru
          _
        // Predicated region
        $region65: #{tpu_custom_call.1} parent=55 // pred_check
          %p517 = pneg %p122
        $region66: #{tpu_custom_call.1} parent=55 // pred_check_branch
          %519 = sbr.rel (%p517) target = $region68
        $region67: #{tpu_custom_call.1} parent=55 // pred_region
          %s520 = sand.u32 %s34, 1
          %s521 = scalar_lea.sflag [#allocation6], %s520
          %s522 = sand.u32 %s112, 1
          %s523 = smul.addr %s522, 8
          %s524 = scalar_lea.vmem [#allocation7], %s523
          %s526 = ssub.s32 128, 128
          %527 = vsyncadd %s521, %s526
          %s528 = smul.addr %s41, 128
          %s529 = scalar_lea.hbm %s2, %s528
          %s531 = sshll.u32 %s524, 4
          %s532 = int_to_ptr.vmem [resolvable:$true] %s531
          %534 = dma.hbm_to_vmem [thread:$0]  %s529, 128, %s532, %s521
        $region68: #{tpu_custom_call.1} parent=55 // pred_fallthru
          _
        // Predicated region
        $region69: #{tpu_custom_call.1} parent=55 // pred_check
          %p535 = pneg %p148
        $region70: #{tpu_custom_call.1} parent=55 // pred_check_branch
          %537 = sbr.rel (%p535) target = $region72
        $region71: #{tpu_custom_call.1} parent=55 // pred_region
          %s538 = sand.u32 %s34, 1
          %s539 = scalar_lea.sflag [#allocation9], %s538
          %s540 = sand.u32 %s138, 1
          %s541 = smul.addr %s540, 8
          %s542 = scalar_lea.vmem [#allocation8], %s541
          %s544 = ssub.s32 128, 128
          %545 = vsyncadd %s539, %s544
          %s546 = smul.addr %s41, 128
          %s547 = scalar_lea.hbm %s3, %s546
          %s549 = sshll.u32 %s542, 4
          %s550 = int_to_ptr.vmem [resolvable:$true] %s549
          %552 = dma.hbm_to_vmem [thread:$0]  %s547, 128, %s550, %s539
        $region72: #{tpu_custom_call.1} parent=55 // pred_fallthru
          _
      $region56: #{tpu_custom_call.1} parent=5 // pred_fallthru
        _
      %p553 = scmp.le.s32.totalorder 1, %s34
      %p554 = scmp.lt.s32.totalorder %s34, 3
      %p555 = pnand %p553, %p554
      %p556 = pneg %p555
      // Predicated region
      $region73: #{tpu_custom_call.1} parent=5 // pred_check
        _
      $region74: #{tpu_custom_call.1} parent=5 // pred_check_branch
        %558 = sbr.rel (%p555) target = $region76
      $region75: #{tpu_custom_call.1} parent=5 // pred_region
        %s559 = ssub.s32 %s34, 1
        %s560 = sand.u32 %s61, 1
        %s561 = scalar_lea.sflag [#allocation3], %s560
        %s562 = sand.u32 %s61, 1
        %s563 = smul.addr %s562, 8
        %s564 = scalar_lea.vmem [#allocation2], %s563
        // Predicated region
        $region77: #{tpu_custom_call.1} parent=75 // pred_check
          %p565 = pneg %p74
        $region78: #{tpu_custom_call.1} parent=75 // pred_check_branch
          %567 = sbr.rel (%p565) target = $region80
        $region79: #{tpu_custom_call.1} parent=75 // pred_region
          %568 = dma.done %s561, 128
        $region80: #{tpu_custom_call.1} parent=75 // pred_fallthru
          _
        %s569 = sand.u32 %s39, 1
        %s570 = scalar_lea.sflag [#allocation6], %s569
        %s571 = sand.u32 %s89, 1
        %s572 = smul.addr %s571, 8
        %s573 = scalar_lea.vmem [#allocation5], %s572
        // Predicated region
        $region81: #{tpu_custom_call.1} parent=75 // pred_check
          %p574 = pneg %p102
        $region82: #{tpu_custom_call.1} parent=75 // pred_check_branch
          %576 = sbr.rel (%p574) target = $region84
        $region83: #{tpu_custom_call.1} parent=75 // pred_region
          %577 = dma.done %s570, 128
        $region84: #{tpu_custom_call.1} parent=75 // pred_fallthru
          _
        %s578 = sand.u32 %s39, 1
        %s579 = scalar_lea.sflag [#allocation6], %s578
        %s580 = sand.u32 %s115, 1
        %s581 = smul.addr %s580, 8
        %s582 = scalar_lea.vmem [#allocation7], %s581
        // Predicated region
        $region85: #{tpu_custom_call.1} parent=75 // pred_check
          %p583 = pneg %p128
        $region86: #{tpu_custom_call.1} parent=75 // pred_check_branch
          %585 = sbr.rel (%p583) target = $region88
        $region87: #{tpu_custom_call.1} parent=75 // pred_region
          %586 = dma.done %s579, 128
        $region88: #{tpu_custom_call.1} parent=75 // pred_fallthru
          _
        %s587 = sand.u32 %s39, 1
        %s588 = scalar_lea.sflag [#allocation9], %s587
        %s589 = sand.u32 %s141, 1
        %s590 = smul.addr %s589, 8
        %s591 = scalar_lea.vmem [#allocation8], %s590
        // Predicated region
        $region89: #{tpu_custom_call.1} parent=75 // pred_check
          %p592 = pneg %p154
        $region90: #{tpu_custom_call.1} parent=75 // pred_check_branch
          %594 = sbr.rel (%p592) target = $region92
        $region91: #{tpu_custom_call.1} parent=75 // pred_region
          %595 = dma.done %s588, 128
        $region92: #{tpu_custom_call.1} parent=75 // pred_fallthru
          _
        // Predicated region
        $region93: #{tpu_custom_call.1} parent=75 // pred_check
          %p596 = pneg %p175
        $region94: #{tpu_custom_call.1} parent=75 // pred_check_branch
          %598 = sbr.rel (%p596) target = $region96
        $region95: #{tpu_custom_call.1} parent=75 // pred_region
          %599 = dma.done [#allocation9], 256
        $region96: #{tpu_custom_call.1} parent=75 // pred_fallthru
          _
        // Predicated region
        $region97: #{tpu_custom_call.1} parent=75 // pred_check
          %p600 = pneg %p217
        $region98: #{tpu_custom_call.1} parent=75 // pred_check_branch
          %602 = sbr.rel (%p600) target = $region100
        $region99: #{tpu_custom_call.1} parent=75 // pred_region
          %603 = dma.done [#allocation12], 256
        $region100: #{tpu_custom_call.1} parent=75 // pred_fallthru
          _
        // Predicated region
        $region101: #{tpu_custom_call.1} parent=75 // pred_check
          %p604 = pneg %p259
        $region102: #{tpu_custom_call.1} parent=75 // pred_check_branch
          %606 = sbr.rel (%p604) target = $region104
        $region103: #{tpu_custom_call.1} parent=75 // pred_region
          %607 = dma.done [#allocation12], 256
        $region104: #{tpu_custom_call.1} parent=75 // pred_fallthru
          _
        // Predicated region
        $region105: #{tpu_custom_call.1} parent=75 // pred_check
          %p608 = pneg %p280
        $region106: #{tpu_custom_call.1} parent=75 // pred_check_branch
          %610 = sbr.rel (%p608) target = $region108
        $region107: #{tpu_custom_call.1} parent=75 // pred_region
          %611 = dma.done [#allocation15], 16
        $region108: #{tpu_custom_call.1} parent=75 // pred_fallthru
          _
        %s612 = sand.u32 %s61, 1
        %s613 = scalar_lea.sflag [#allocation3], %s612
        %s614 = sand.u32 %s61, 1
        %s615 = smul.addr %s614, 8
        %s616 = scalar_lea.vmem [#allocation2], %s615
        %p617 = pneg %p74
        %p618 = pneg %p71
        %s619 = sand.u32 %s39, 1
        %s620 = scalar_lea.sflag [#allocation6], %s619
        %s621 = sand.u32 %s89, 1
        %s622 = smul.addr %s621, 8
        %s623 = scalar_lea.vmem [#allocation5], %s622
        %p624 = pneg %p102
        %p625 = pneg %p99
        %s626 = sand.u32 %s39, 1
        %s627 = scalar_lea.sflag [#allocation6], %s626
        %s628 = sand.u32 %s115, 1
        %s629 = smul.addr %s628, 8
        %s630 = scalar_lea.vmem [#allocation7], %s629
        %p631 = pneg %p128
        %p632 = pneg %p125
        %s633 = sand.u32 %s39, 1
        %s634 = scalar_lea.sflag [#allocation9], %s633
        %s635 = sand.u32 %s141, 1
        %s636 = smul.addr %s635, 8
        %s637 = scalar_lea.vmem [#allocation8], %s636
        %p638 = pneg %p154
        %p639 = pneg %p151
        %p640 = pneg %p175
        %p641 = pneg %p172
        %p642 = pneg %p196
        %p643 = pneg %p193
        %p644 = pneg %p217
        %p645 = pneg %p214
        %p646 = pneg %p238
        %p647 = pneg %p235
        %p648 = pneg %p259
        %p649 = pneg %p256
        %p650 = pneg %p280
        %p651 = pneg %p277
        %p652 = pneg %p301
        %p653 = pneg %p298
        %p654 = pneg %p322
        %p655 = pneg %p319
        %p656 = pneg %p343
        %p657 = pneg %p340
        %p658 = pneg %p364
        %p659 = pneg %p361
        %p660 = pneg %p392
        %p661 = pneg %p389
        %s662 = sand.u32 %s379, 1
        %s663 = scalar_lea.sflag [#allocation4], %s662
        %s664 = sand.u32 %s379, 1
        %s665 = smul.addr %s664, 8
        %s666 = scalar_lea.vmem [#allocation16], %s665
        %v668 = vld [vmem:[%s564] sm:$0xff]
        %v669 = vld [vmem:[%s582] sm:$0xff]
        %v670 = vld [vmem:[%s573] sm:$0xff]
        %v671 = vadd.f32 %v668, %v670
        %v672 = vld [vmem:[%s591] sm:$0xff]
        %v673 = vadd.f32 %v669, %v672
        %v674 = vpack.c.bf16 %v671, %v671
        %v675 = vld [vmem:[#allocation10] sm:$0xf]
        %v676 = vld [vmem:[#allocation10 + $0x4] sm:$0xf]
        %v677 = vld [vmem:[#allocation10 + $0x8] sm:$0xf]
        %v678 = vld [vmem:[#allocation10 + $0xc] sm:$0xf]
        %v679 = vld [vmem:[%s5] sm:$0x1]
        %v681 = vlaneseq
        %v682 = vshrl.u32 %v681, 7
        %v683 = vsub.s32 0, %v682
        %v684 = vrot.slane %v679, %v683
        %v690 = vunpack.c.l.b16 %v675
        %v691 = vunpack.c.l.b16 %v676
        %v692 = vunpack.c.l.b16 %v677
        %v693 = vunpack.c.l.b16 %v678
        %v694 = vpack.c.b16 %v691, %v690
        %v695 = vpack.c.b16 %v693, %v692
        %vm698 = vcmask 261120
        %v700 = vsel %vm698, %v674, 0
        %702 = vmatprep.subr.bf16.mxu0 0
        %703 = vmatpush1.bf16.msra.mxu0 0
        %704 = vmatprep.subr.bf16.mxu0 0
        %705 = vmatpush1.bf16.msra.mxu0 0
        %706 = vmatprep.subr.bf16.mxu0 0
        %707 = vmatpush1.bf16.msra.mxu0 0
        %708 = vmatprep.subr.bf16.mxu0 0
        %709 = vmatpush1.bf16.msra.mxu0 0
        %710 = vmatprep.subr.bf16.mxu0 0
        %711 = vmatpush1.bf16.msra.mxu0 0
        %712 = vmatprep.subr.bf16.mxu0 0
        %713 = vmatpush1.bf16.msra.mxu0 0
        %714 = vmatprep.subr.bf16.mxu0 0
        %715 = vmatpush1.bf16.msra.mxu0 %v695
        %716 = vmatprep.subr.bf16.mxu0 0
        %717 = vmatpush1.bf16.msra.mxu0 %v694
        %718 = vmatprep.subr.bf16.mxu0 0
        %719 = vmatpush2.bf16.msra.mxu0 0
        %720 = vmatprep.subr.bf16.mxu0 0
        %721 = vmatpush2.bf16.msra.mxu0 0
        %722 = vmatprep.subr.bf16.mxu0 0
        %723 = vmatpush2.bf16.msra.mxu0 0
        %724 = vmatprep.subr.bf16.mxu0 0
        %725 = vmatpush2.bf16.msra.mxu0 0
        %726 = vmatprep.subr.bf16.mxu0 0
        %727 = vmatpush2.bf16.msra.mxu0 0
        %728 = vmatprep.subr.bf16.mxu0 0
        %729 = vmatpush2.bf16.msra.mxu0 0
        %730 = vmatprep.subr.bf16.mxu0 0
        %731 = vmatpush2.bf16.msra.mxu0 0
        %732 = vmatprep.subr.bf16.mxu0 0
        %733 = vmatpush2.bf16.msra.mxu0 0
        %734 = vmatprep.mubr.bf16.mxu0 0
        %735 = vmatmul.mubr.bf16.gmra.mxu0 %v700
        %v736 = vpop.f32.mrf.mxu0
        %v737 = vadd.f32 %v684, %v736
        %v738 = vpop.f32.mrf.mxu0
        %v739 = vpop.f32.mrf.mxu0
        %v740 = vpop.f32.mrf.mxu0
        %741 = vdwg.mxu0
        %v742 = vmul.f32 %v737, 0.35355338
        %v743 = vpack.c.bf16 %v673, %v673
        %v744 = vld [vmem:[#allocation11] sm:$0xf]
        %v745 = vld [vmem:[#allocation11 + $0x4] sm:$0xf]
        %v746 = vld [vmem:[#allocation11 + $0x8] sm:$0xf]
        %v747 = vld [vmem:[#allocation11 + $0xc] sm:$0xf]
        %v748 = vld [vmem:[%s7] sm:$0x1]
        %v750 = vlaneseq
        %v751 = vshrl.u32 %v750, 7
        %v752 = vsub.s32 0, %v751
        %v753 = vrot.slane %v748, %v752
        %v759 = vunpack.c.l.b16 %v744
        %v760 = vunpack.c.l.b16 %v745
        %v761 = vunpack.c.l.b16 %v746
        %v762 = vunpack.c.l.b16 %v747
        %v763 = vpack.c.b16 %v760, %v759
        %v764 = vpack.c.b16 %v762, %v761
        %v768 = vsel %vm698, %v743, 0
        %770 = vmatprep.subr.bf16.mxu0 0
        %771 = vmatpush1.bf16.msra.mxu0 0
        %772 = vmatprep.subr.bf16.mxu0 0
        %773 = vmatpush1.bf16.msra.mxu0 0
        %774 = vmatprep.subr.bf16.mxu0 0
        %775 = vmatpush1.bf16.msra.mxu0 0
        %776 = vmatprep.subr.bf16.mxu0 0
        %777 = vmatpush1.bf16.msra.mxu0 0
        %778 = vmatprep.subr.bf16.mxu0 0
        %779 = vmatpush1.bf16.msra.mxu0 0
        %780 = vmatprep.subr.bf16.mxu0 0
        %781 = vmatpush1.bf16.msra.mxu0 0
        %782 = vmatprep.subr.bf16.mxu0 0
        %783 = vmatpush1.bf16.msra.mxu0 %v764
        %784 = vmatprep.subr.bf16.mxu0 0
        %785 = vmatpush1.bf16.msra.mxu0 %v763
        %786 = vmatprep.subr.bf16.mxu0 0
        %787 = vmatpush2.bf16.msra.mxu0 0
        %788 = vmatprep.subr.bf16.mxu0 0
        %789 = vmatpush2.bf16.msra.mxu0 0
        %790 = vmatprep.subr.bf16.mxu0 0
        %791 = vmatpush2.bf16.msra.mxu0 0
        %792 = vmatprep.subr.bf16.mxu0 0
        %793 = vmatpush2.bf16.msra.mxu0 0
        %794 = vmatprep.subr.bf16.mxu0 0
        %795 = vmatpush2.bf16.msra.mxu0 0
        %796 = vmatprep.subr.bf16.mxu0 0
        %797 = vmatpush2.bf16.msra.mxu0 0
        %798 = vmatprep.subr.bf16.mxu0 0
        %799 = vmatpush2.bf16.msra.mxu0 0
        %800 = vmatprep.subr.bf16.mxu0 0
        %801 = vmatpush2.bf16.msra.mxu0 0
        %802 = vmatprep.mubr.bf16.mxu0 0
        %803 = vmatmul.mubr.bf16.gmra.mxu0 %v768
        %v804 = vpop.f32.mrf.mxu0
        %v805 = vadd.f32 %v753, %v804
        %v806 = vpop.f32.mrf.mxu0
        %v807 = vpop.f32.mrf.mxu0
        %v808 = vpop.f32.mrf.mxu0
        %809 = vdwg.mxu0
        %v810 = vpack.c.bf16 %v669, %v669
        %v811 = vld [vmem:[#allocation13] sm:$0xf]
        %v812 = vld [vmem:[#allocation13 + $0x4] sm:$0xf]
        %v813 = vld [vmem:[#allocation13 + $0x8] sm:$0xf]
        %v814 = vld [vmem:[#allocation13 + $0xc] sm:$0xf]
        %v815 = vld [vmem:[#allocation14] sm:$0x1]
        %v817 = vlaneseq
        %v818 = vshrl.u32 %v817, 7
        %v819 = vsub.s32 0, %v818
        %v820 = vrot.slane %v815, %v819
        %v826 = vunpack.c.l.b16 %v811
        %v827 = vunpack.c.l.b16 %v812
        %v828 = vunpack.c.l.b16 %v813
        %v829 = vunpack.c.l.b16 %v814
        %v830 = vpack.c.b16 %v827, %v826
        %v831 = vpack.c.b16 %v829, %v828
        %v835 = vsel %vm698, %v810, 0
        %837 = vmatprep.subr.bf16.mxu0 0
        %838 = vmatpush1.bf16.msra.mxu0 0
        %839 = vmatprep.subr.bf16.mxu0 0
        %840 = vmatpush1.bf16.msra.mxu0 0
        %841 = vmatprep.subr.bf16.mxu0 0
        %842 = vmatpush1.bf16.msra.mxu0 0
        %843 = vmatprep.subr.bf16.mxu0 0
        %844 = vmatpush1.bf16.msra.mxu0 0
        %845 = vmatprep.subr.bf16.mxu0 0
        %846 = vmatpush1.bf16.msra.mxu0 0
        %847 = vmatprep.subr.bf16.mxu0 0
        %848 = vmatpush1.bf16.msra.mxu0 0
        %849 = vmatprep.subr.bf16.mxu0 0
        %850 = vmatpush1.bf16.msra.mxu0 %v831
        %851 = vmatprep.subr.bf16.mxu0 0
        %852 = vmatpush1.bf16.msra.mxu0 %v830
        %853 = vmatprep.subr.bf16.mxu0 0
        %854 = vmatpush2.bf16.msra.mxu0 0
        %855 = vmatprep.subr.bf16.mxu0 0
        %856 = vmatpush2.bf16.msra.mxu0 0
        %857 = vmatprep.subr.bf16.mxu0 0
        %858 = vmatpush2.bf16.msra.mxu0 0
        %859 = vmatprep.subr.bf16.mxu0 0
        %860 = vmatpush2.bf16.msra.mxu0 0
        %861 = vmatprep.subr.bf16.mxu0 0
        %862 = vmatpush2.bf16.msra.mxu0 0
        %863 = vmatprep.subr.bf16.mxu0 0
        %864 = vmatpush2.bf16.msra.mxu0 0
        %865 = vmatprep.subr.bf16.mxu0 0
        %866 = vmatpush2.bf16.msra.mxu0 0
        %867 = vmatprep.subr.bf16.mxu0 0
        %868 = vmatpush2.bf16.msra.mxu0 0
        %869 = vmatprep.mubr.bf16.mxu0 0
        %870 = vmatmul.mubr.bf16.gmra.mxu0 %v835
        %v871 = vpop.f32.mrf.mxu0
        %v872 = vadd.f32 %v820, %v871
        %v873 = vpop.f32.mrf.mxu0
        %v874 = vpop.f32.mrf.mxu0
        %v875 = vpop.f32.mrf.mxu0
        %876 = vdwg.mxu0
        %v877 = vpack.c.bf16 %v742, %v742
        %v878 = vpack.c.bf16 %v805, %v805
        %v879 = vpack.c.bf16 %v872, %v872
        %v880 = vld [vmem:[%s10] sm:$0xf]
        %v881 = vld [vmem:[%s10 + $0x4] sm:$0xf]
        %v882 = vld [vmem:[%s10 + $0x8] sm:$0xf]
        %v883 = vld [vmem:[%s10 + $0xc] sm:$0xf]
        %vm884 = vcmask 64512
        %v886 = vsel %vm884, %v877, 0
        %v889 = vsel %vm884, %v878, 0
        %891 = vmatprep.subr.bf16.mxu0 0
        %892 = vmatpush1.bf16.xpose.msra.mxu0 0
        %893 = vmatprep.subr.bf16.mxu0 0
        %894 = vmatpush1.bf16.xpose.msra.mxu0 0
        %895 = vmatprep.subr.bf16.mxu0 0
        %896 = vmatpush1.bf16.xpose.msra.mxu0 0
        %897 = vmatprep.subr.bf16.mxu0 0
        %898 = vmatpush1.bf16.xpose.msra.mxu0 0
        %899 = vmatprep.subr.bf16.mxu0 0
        %900 = vmatpush1.bf16.xpose.msra.mxu0 0
        %901 = vmatprep.subr.bf16.mxu0 0
        %902 = vmatpush1.bf16.xpose.msra.mxu0 0
        %903 = vmatprep.subr.bf16.mxu0 0
        %904 = vmatpush1.bf16.xpose.msra.mxu0 0
        %905 = vmatprep.subr.bf16.mxu0 0
        %906 = vmatpush1.bf16.xpose.msra.mxu0 %v889
        %907 = vmatprep.subr.bf16.mxu0 0
        %908 = vmatpush2.bf16.xpose.msra.mxu0 0
        %909 = vmatprep.subr.bf16.mxu0 0
        %910 = vmatpush2.bf16.xpose.msra.mxu0 0
        %911 = vmatprep.subr.bf16.mxu0 0
        %912 = vmatpush2.bf16.xpose.msra.mxu0 0
        %913 = vmatprep.subr.bf16.mxu0 0
        %914 = vmatpush2.bf16.xpose.msra.mxu0 0
        %915 = vmatprep.subr.bf16.mxu0 0
        %916 = vmatpush2.bf16.xpose.msra.mxu0 0
        %917 = vmatprep.subr.bf16.mxu0 0
        %918 = vmatpush2.bf16.xpose.msra.mxu0 0
        %919 = vmatprep.subr.bf16.mxu0 0
        %920 = vmatpush2.bf16.xpose.msra.mxu0 0
        %921 = vmatprep.subr.bf16.mxu0 0
        %922 = vmatpush2.bf16.xpose.msra.mxu0 0
        %923 = vmatprep.mubr.bf16.mxu0 0
        %924 = vmatmul.mubr.bf16.gmra.mxu0 %v886
        %v925 = vpop.f32.mrf.mxu0
        %v926 = vadd.f32 0.0, %v925
        %v927 = vpop.f32.mrf.mxu0
        %v928 = vpop.f32.mrf.mxu0
        %v929 = vpop.f32.mrf.mxu0
        %930 = vdwg.mxu0
        %v931 = vsel %vm884, %v926, -inf
        %932 = vmax.xlane.f32.xlu0 %v931
        %v933 = vpop.xlane.xlu0 %932
        %v934 = vsub.f32 %v926, %v933
        %v935 = vmul.f32 %v934, 1.442695
        %v936 = vpow.pop %v935
        %v937 = vsel %vm884, %v936, 0.0
        %938 = vadd.xlane.f32.xlu0 %v937
        %v939 = vpop.xlane.xlu0 %938
        %v940 = vrcp.pop %v939
        %v941 = vmul.f32 %v936, %v940
        %v942 = vpack.c.bf16 %v941, %v941
        %v944 = vsel %vm884, %v942, 0
        %vm946 = vcmask 1043456
        %v948 = vsel %vm946, %v879, 0
        %950 = vmatprep.subr.bf16.mxu0 0
        %951 = vmatpush1.bf16.msra.mxu0 0
        %952 = vmatprep.subr.bf16.mxu0 0
        %953 = vmatpush1.bf16.msra.mxu0 0
        %954 = vmatprep.subr.bf16.mxu0 0
        %955 = vmatpush1.bf16.msra.mxu0 0
        %956 = vmatprep.subr.bf16.mxu0 0
        %957 = vmatpush1.bf16.msra.mxu0 0
        %958 = vmatprep.subr.bf16.mxu0 0
        %959 = vmatpush1.bf16.msra.mxu0 0
        %960 = vmatprep.subr.bf16.mxu0 0
        %961 = vmatpush1.bf16.msra.mxu0 0
        %962 = vmatprep.subr.bf16.mxu0 0
        %963 = vmatpush1.bf16.msra.mxu0 0
        %964 = vmatprep.subr.bf16.mxu0 0
        %965 = vmatpush1.bf16.msra.mxu0 %v948
        %966 = vmatprep.subr.bf16.mxu0 0
        %967 = vmatpush2.bf16.msra.mxu0 0
        %968 = vmatprep.subr.bf16.mxu0 0
        %969 = vmatpush2.bf16.msra.mxu0 0
        %970 = vmatprep.subr.bf16.mxu0 0
        %971 = vmatpush2.bf16.msra.mxu0 0
        %972 = vmatprep.subr.bf16.mxu0 0
        %973 = vmatpush2.bf16.msra.mxu0 0
        %974 = vmatprep.subr.bf16.mxu0 0
        %975 = vmatpush2.bf16.msra.mxu0 0
        %976 = vmatprep.subr.bf16.mxu0 0
        %977 = vmatpush2.bf16.msra.mxu0 0
        %978 = vmatprep.subr.bf16.mxu0 0
        %979 = vmatpush2.bf16.msra.mxu0 0
        %980 = vmatprep.subr.bf16.mxu0 0
        %981 = vmatpush2.bf16.msra.mxu0 0
        %982 = vmatprep.mubr.bf16.mxu0 0
        %983 = vmatmul.mubr.bf16.gmra.mxu0 %v944
        %v984 = vpop.f32.mrf.mxu0
        %v985 = vadd.f32 0.0, %v984
        %v986 = vpop.f32.mrf.mxu0
        %v987 = vpop.f32.mrf.mxu0
        %v988 = vpop.f32.mrf.mxu0
        %989 = vdwg.mxu0
        %v990 = vpack.c.bf16 %v985, %v985
        %992 = vrot.lane.b32.xlu0 %v877, 120
        %v993 = vpop.permute.xlu0 %992
        %995 = vrot.lane.b32.xlu0 %v878, 120
        %v996 = vpop.permute.xlu0 %995
        %v998 = vsel %vm884, %v993, 0
        %v1001 = vsel %vm884, %v996, 0
        %1003 = vmatprep.subr.bf16.mxu0 0
        %1004 = vmatpush1.bf16.xpose.msra.mxu0 0
        %1005 = vmatprep.subr.bf16.mxu0 0
        %1006 = vmatpush1.bf16.xpose.msra.mxu0 0
        %1007 = vmatprep.subr.bf16.mxu0 0
        %1008 = vmatpush1.bf16.xpose.msra.mxu0 0
        %1009 = vmatprep.subr.bf16.mxu0 0
        %1010 = vmatpush1.bf16.xpose.msra.mxu0 0
        %1011 = vmatprep.subr.bf16.mxu0 0
        %1012 = vmatpush1.bf16.xpose.msra.mxu0 0
        %1013 = vmatprep.subr.bf16.mxu0 0
        %1014 = vmatpush1.bf16.xpose.msra.mxu0 0
        %1015 = vmatprep.subr.bf16.mxu0 0
        %1016 = vmatpush1.bf16.xpose.msra.mxu0 0
        %1017 = vmatprep.subr.bf16.mxu0 0
        %1018 = vmatpush1.bf16.xpose.msra.mxu0 %v1001
        %1019 = vmatprep.subr.bf16.mxu0 0
        %1020 = vmatpush2.bf16.xpose.msra.mxu0 0
        %1021 = vmatprep.subr.bf16.mxu0 0
        %1022 = vmatpush2.bf16.xpose.msra.mxu0 0
        %1023 = vmatprep.subr.bf16.mxu0 0
        %1024 = vmatpush2.bf16.xpose.msra.mxu0 0
        %1025 = vmatprep.subr.bf16.mxu0 0
        %1026 = vmatpush2.bf16.xpose.msra.mxu0 0
        %1027 = vmatprep.subr.bf16.mxu0 0
        %1028 = vmatpush2.bf16.xpose.msra.mxu0 0
        %1029 = vmatprep.subr.bf16.mxu0 0
        %1030 = vmatpush2.bf16.xpose.msra.mxu0 0
        %1031 = vmatprep.subr.bf16.mxu0 0
        %1032 = vmatpush2.bf16.xpose.msra.mxu0 0
        %1033 = vmatprep.subr.bf16.mxu0 0
        %1034 = vmatpush2.bf16.xpose.msra.mxu0 0
        %1035 = vmatprep.mubr.bf16.mxu0 0
        %1036 = vmatmul.mubr.bf16.gmra.mxu0 %v998
        %v1037 = vpop.f32.mrf.mxu0
        %v1038 = vadd.f32 0.0, %v1037
        %v1039 = vpop.f32.mrf.mxu0
        %v1040 = vpop.f32.mrf.mxu0
        %v1041 = vpop.f32.mrf.mxu0
        %1042 = vdwg.mxu0
        %v1043 = vsel %vm884, %v1038, -inf
        %1044 = vmax.xlane.f32.xlu0 %v1043
        %v1045 = vpop.xlane.xlu0 %1044
        %v1046 = vsub.f32 %v1038, %v1045
        %v1047 = vmul.f32 %v1046, 1.442695
        %v1048 = vpow.pop %v1047
        %v1049 = vsel %vm884, %v1048, 0.0
        %1050 = vadd.xlane.f32.xlu0 %v1049
        %v1051 = vpop.xlane.xlu0 %1050
        %v1052 = vrcp.pop %v1051
        %v1053 = vmul.f32 %v1048, %v1052
        %v1054 = vpack.c.bf16 %v1053, %v1053
        %1056 = vrot.lane.b32.xlu0 %v879, 120
        %v1057 = vpop.permute.xlu0 %1056
        %v1059 = vsel %vm884, %v1054, 0
        %v1062 = vsel %vm946, %v1057, 0
        %1064 = vmatprep.subr.bf16.mxu0 0
        %1065 = vmatpush1.bf16.msra.mxu0 0
        %1066 = vmatprep.subr.bf16.mxu0 0
        %1067 = vmatpush1.bf16.msra.mxu0 0
        %1068 = vmatprep.subr.bf16.mxu0 0
        %1069 = vmatpush1.bf16.msra.mxu0 0
        %1070 = vmatprep.subr.bf16.mxu0 0
        %1071 = vmatpush1.bf16.msra.mxu0 0
        %1072 = vmatprep.subr.bf16.mxu0 0
        %1073 = vmatpush1.bf16.msra.mxu0 0
        %1074 = vmatprep.subr.bf16.mxu0 0
        %1075 = vmatpush1.bf16.msra.mxu0 0
        %1076 = vmatprep.subr.bf16.mxu0 0
        %1077 = vmatpush1.bf16.msra.mxu0 0
        %1078 = vmatprep.subr.bf16.mxu0 0
        %1079 = vmatpush1.bf16.msra.mxu0 %v1062
        %1080 = vmatprep.subr.bf16.mxu0 0
        %1081 = vmatpush2.bf16.msra.mxu0 0
        %1082 = vmatprep.subr.bf16.mxu0 0
        %1083 = vmatpush2.bf16.msra.mxu0 0
        %1084 = vmatprep.subr.bf16.mxu0 0
        %1085 = vmatpush2.bf16.msra.mxu0 0
        %1086 = vmatprep.subr.bf16.mxu0 0
        %1087 = vmatpush2.bf16.msra.mxu0 0
        %1088 = vmatprep.subr.bf16.mxu0 0
        %1089 = vmatpush2.bf16.msra.mxu0 0
        %1090 = vmatprep.subr.bf16.mxu0 0
        %1091 = vmatpush2.bf16.msra.mxu0 0
        %1092 = vmatprep.subr.bf16.mxu0 0
        %1093 = vmatpush2.bf16.msra.mxu0 0
        %1094 = vmatprep.subr.bf16.mxu0 0
        %1095 = vmatpush2.bf16.msra.mxu0 0
        %1096 = vmatprep.mubr.bf16.mxu0 0
        %1097 = vmatmul.mubr.bf16.gmra.mxu0 %v1059
        %v1098 = vpop.f32.mrf.mxu0
        %v1099 = vadd.f32 0.0, %v1098
        %v1100 = vpop.f32.mrf.mxu0
        %v1101 = vpop.f32.mrf.mxu0
        %v1102 = vpop.f32.mrf.mxu0
        %1103 = vdwg.mxu0
        %v1104 = vpack.c.bf16 %v1099, %v1099
        %v1106 = vsel %vm884, %v1104, 0
        %v1109 = vsel %vm946, %v881, 0
        %1111 = vmatprep.subr.bf16.mxu0 0
        %1112 = vmatpush1.bf16.msra.mxu0 0
        %1113 = vmatprep.subr.bf16.mxu0 0
        %1114 = vmatpush1.bf16.msra.mxu0 0
        %1115 = vmatprep.subr.bf16.mxu0 0
        %1116 = vmatpush1.bf16.msra.mxu0 0
        %1117 = vmatprep.subr.bf16.mxu0 0
        %1118 = vmatpush1.bf16.msra.mxu0 0
        %1119 = vmatprep.subr.bf16.mxu0 0
        %1120 = vmatpush1.bf16.msra.mxu0 0
        %1121 = vmatprep.subr.bf16.mxu0 0
        %1122 = vmatpush1.bf16.msra.mxu0 0
        %1123 = vmatprep.subr.bf16.mxu0 0
        %1124 = vmatpush1.bf16.msra.mxu0 0
        %1125 = vmatprep.subr.bf16.mxu0 0
        %1126 = vmatpush1.bf16.msra.mxu0 %v1109
        %1127 = vmatprep.subr.bf16.mxu0 0
        %1128 = vmatpush2.bf16.msra.mxu0 0
        %1129 = vmatprep.subr.bf16.mxu0 0
        %1130 = vmatpush2.bf16.msra.mxu0 0
        %1131 = vmatprep.subr.bf16.mxu0 0
        %1132 = vmatpush2.bf16.msra.mxu0 0
        %1133 = vmatprep.subr.bf16.mxu0 0
        %1134 = vmatpush2.bf16.msra.mxu0 0
        %1135 = vmatprep.subr.bf16.mxu0 0
        %1136 = vmatpush2.bf16.msra.mxu0 0
        %1137 = vmatprep.subr.bf16.mxu0 0
        %1138 = vmatpush2.bf16.msra.mxu0 0
        %1139 = vmatprep.subr.bf16.mxu0 0
        %1140 = vmatpush2.bf16.msra.mxu0 0
        %1141 = vmatprep.subr.bf16.mxu0 0
        %1142 = vmatpush2.bf16.msra.mxu0 0
        %1143 = vmatprep.mubr.bf16.mxu0 0
        %1144 = vmatmul.mubr.bf16.gmra.mxu0 %v1106
        %v1145 = vpop.f32.mrf.mxu0
        %v1146 = vadd.f32 0.0, %v1145
        %v1147 = vpop.f32.mrf.mxu0
        %v1148 = vpop.f32.mrf.mxu0
        %v1149 = vpop.f32.mrf.mxu0
        %1150 = vdwg.mxu0
        %v1152 = vsel %vm884, %v990, 0
        %v1155 = vsel %vm946, %v880, 0
        %1157 = vmatprep.subr.bf16.mxu0 0
        %1158 = vmatpush1.bf16.msra.mxu0 0
        %1159 = vmatprep.subr.bf16.mxu0 0
        %1160 = vmatpush1.bf16.msra.mxu0 0
        %1161 = vmatprep.subr.bf16.mxu0 0
        %1162 = vmatpush1.bf16.msra.mxu0 0
        %1163 = vmatprep.subr.bf16.mxu0 0
        %1164 = vmatpush1.bf16.msra.mxu0 0
        %1165 = vmatprep.subr.bf16.mxu0 0
        %1166 = vmatpush1.bf16.msra.mxu0 0
        %1167 = vmatprep.subr.bf16.mxu0 0
        %1168 = vmatpush1.bf16.msra.mxu0 0
        %1169 = vmatprep.subr.bf16.mxu0 0
        %1170 = vmatpush1.bf16.msra.mxu0 0
        %1171 = vmatprep.subr.bf16.mxu0 0
        %1172 = vmatpush1.bf16.msra.mxu0 %v1155
        %1173 = vmatprep.subr.bf16.mxu0 0
        %1174 = vmatpush2.bf16.msra.mxu0 0
        %1175 = vmatprep.subr.bf16.mxu0 0
        %1176 = vmatpush2.bf16.msra.mxu0 0
        %1177 = vmatprep.subr.bf16.mxu0 0
        %1178 = vmatpush2.bf16.msra.mxu0 0
        %1179 = vmatprep.subr.bf16.mxu0 0
        %1180 = vmatpush2.bf16.msra.mxu0 0
        %1181 = vmatprep.subr.bf16.mxu0 0
        %1182 = vmatpush2.bf16.msra.mxu0 0
        %1183 = vmatprep.subr.bf16.mxu0 0
        %1184 = vmatpush2.bf16.msra.mxu0 0
        %1185 = vmatprep.subr.bf16.mxu0 0
        %1186 = vmatpush2.bf16.msra.mxu0 0
        %1187 = vmatprep.subr.bf16.mxu0 0
        %1188 = vmatpush2.bf16.msra.mxu0 0
        %1189 = vmatprep.mubr.bf16.mxu0 0
        %1190 = vmatmul.mubr.bf16.gmra.mxu0 %v1152
        %v1191 = vpop.f32.mrf.mxu0
        %v1192 = vadd.f32 %v1146, %v1191
        %v1193 = vpop.f32.mrf.mxu0
        %v1194 = vpop.f32.mrf.mxu0
        %v1195 = vpop.f32.mrf.mxu0
        %1196 = vdwg.mxu0
        %1197 = vrot.lane.b32.xlu0 %v877, 112
        %v1198 = vpop.permute.xlu0 %1197
        %1199 = vrot.lane.b32.xlu0 %v878, 112
        %v1200 = vpop.permute.xlu0 %1199
        %v1202 = vsel %vm884, %v1198, 0
        %v1205 = vsel %vm884, %v1200, 0
        %1207 = vmatprep.subr.bf16.mxu0 0
        %1208 = vmatpush1.bf16.xpose.msra.mxu0 0
        %1209 = vmatprep.subr.bf16.mxu0 0
        %1210 = vmatpush1.bf16.xpose.msra.mxu0 0
        %1211 = vmatprep.subr.bf16.mxu0 0
        %1212 = vmatpush1.bf16.xpose.msra.mxu0 0
        %1213 = vmatprep.subr.bf16.mxu0 0
        %1214 = vmatpush1.bf16.xpose.msra.mxu0 0
        %1215 = vmatprep.subr.bf16.mxu0 0
        %1216 = vmatpush1.bf16.xpose.msra.mxu0 0
        %1217 = vmatprep.subr.bf16.mxu0 0
        %1218 = vmatpush1.bf16.xpose.msra.mxu0 0
        %1219 = vmatprep.subr.bf16.mxu0 0
        %1220 = vmatpush1.bf16.xpose.msra.mxu0 0
        %1221 = vmatprep.subr.bf16.mxu0 0
        %1222 = vmatpush1.bf16.xpose.msra.mxu0 %v1205
        %1223 = vmatprep.subr.bf16.mxu0 0
        %1224 = vmatpush2.bf16.xpose.msra.mxu0 0
        %1225 = vmatprep.subr.bf16.mxu0 0
        %1226 = vmatpush2.bf16.xpose.msra.mxu0 0
        %1227 = vmatprep.subr.bf16.mxu0 0
        %1228 = vmatpush2.bf16.xpose.msra.mxu0 0
        %1229 = vmatprep.subr.bf16.mxu0 0
        %1230 = vmatpush2.bf16.xpose.msra.mxu0 0
        %1231 = vmatprep.subr.bf16.mxu0 0
        %1232 = vmatpush2.bf16.xpose.msra.mxu0 0
        %1233 = vmatprep.subr.bf16.mxu0 0
        %1234 = vmatpush2.bf16.xpose.msra.mxu0 0
        %1235 = vmatprep.subr.bf16.mxu0 0
        %1236 = vmatpush2.bf16.xpose.msra.mxu0 0
        %1237 = vmatprep.subr.bf16.mxu0 0
        %1238 = vmatpush2.bf16.xpose.msra.mxu0 0
        %1239 = vmatprep.mubr.bf16.mxu0 0
        %1240 = vmatmul.mubr.bf16.gmra.mxu0 %v1202
        %v1241 = vpop.f32.mrf.mxu0
        %v1242 = vadd.f32 0.0, %v1241
        %v1243 = vpop.f32.mrf.mxu0
        %v1244 = vpop.f32.mrf.mxu0
        %v1245 = vpop.f32.mrf.mxu0
        %1246 = vdwg.mxu0
        %v1247 = vsel %vm884, %v1242, -inf
        %1248 = vmax.xlane.f32.xlu0 %v1247
        %v1249 = vpop.xlane.xlu0 %1248
        %v1250 = vsub.f32 %v1242, %v1249
        %v1251 = vmul.f32 %v1250, 1.442695
        %v1252 = vpow.pop %v1251
        %v1253 = vsel %vm884, %v1252, 0.0
        %1254 = vadd.xlane.f32.xlu0 %v1253
        %v1255 = vpop.xlane.xlu0 %1254
        %v1256 = vrcp.pop %v1255
        %v1257 = vmul.f32 %v1252, %v1256
        %v1258 = vpack.c.bf16 %v1257, %v1257
        %1259 = vrot.lane.b32.xlu0 %v879, 112
        %v1260 = vpop.permute.xlu0 %1259
        %v1262 = vsel %vm884, %v1258, 0
        %v1265 = vsel %vm946, %v1260, 0
        %1267 = vmatprep.subr.bf16.mxu0 0
        %1268 = vmatpush1.bf16.msra.mxu0 0
        %1269 = vmatprep.subr.bf16.mxu0 0
        %1270 = vmatpush1.bf16.msra.mxu0 0
        %1271 = vmatprep.subr.bf16.mxu0 0
        %1272 = vmatpush1.bf16.msra.mxu0 0
        %1273 = vmatprep.subr.bf16.mxu0 0
        %1274 = vmatpush1.bf16.msra.mxu0 0
        %1275 = vmatprep.subr.bf16.mxu0 0
        %1276 = vmatpush1.bf16.msra.mxu0 0
        %1277 = vmatprep.subr.bf16.mxu0 0
        %1278 = vmatpush1.bf16.msra.mxu0 0
        %1279 = vmatprep.subr.bf16.mxu0 0
        %1280 = vmatpush1.bf16.msra.mxu0 0
        %1281 = vmatprep.subr.bf16.mxu0 0
        %1282 = vmatpush1.bf16.msra.mxu0 %v1265
        %1283 = vmatprep.subr.bf16.mxu0 0
        %1284 = vmatpush2.bf16.msra.mxu0 0
        %1285 = vmatprep.subr.bf16.mxu0 0
        %1286 = vmatpush2.bf16.msra.mxu0 0
        %1287 = vmatprep.subr.bf16.mxu0 0
        %1288 = vmatpush2.bf16.msra.mxu0 0
        %1289 = vmatprep.subr.bf16.mxu0 0
        %1290 = vmatpush2.bf16.msra.mxu0 0
        %1291 = vmatprep.subr.bf16.mxu0 0
        %1292 = vmatpush2.bf16.msra.mxu0 0
        %1293 = vmatprep.subr.bf16.mxu0 0
        %1294 = vmatpush2.bf16.msra.mxu0 0
        %1295 = vmatprep.subr.bf16.mxu0 0
        %1296 = vmatpush2.bf16.msra.mxu0 0
        %1297 = vmatprep.subr.bf16.mxu0 0
        %1298 = vmatpush2.bf16.msra.mxu0 0
        %1299 = vmatprep.mubr.bf16.mxu0 0
        %1300 = vmatmul.mubr.bf16.gmra.mxu0 %v1262
        %v1301 = vpop.f32.mrf.mxu0
        %v1302 = vadd.f32 0.0, %v1301
        %v1303 = vpop.f32.mrf.mxu0
        %v1304 = vpop.f32.mrf.mxu0
        %v1305 = vpop.f32.mrf.mxu0
        %1306 = vdwg.mxu0
        %v1307 = vpack.c.bf16 %v1302, %v1302
        %v1309 = vsel %vm884, %v1307, 0
        %v1312 = vsel %vm946, %v882, 0
        %1314 = vmatprep.subr.bf16.mxu0 0
        %1315 = vmatpush1.bf16.msra.mxu0 0
        %1316 = vmatprep.subr.bf16.mxu0 0
        %1317 = vmatpush1.bf16.msra.mxu0 0
        %1318 = vmatprep.subr.bf16.mxu0 0
        %1319 = vmatpush1.bf16.msra.mxu0 0
        %1320 = vmatprep.subr.bf16.mxu0 0
        %1321 = vmatpush1.bf16.msra.mxu0 0
        %1322 = vmatprep.subr.bf16.mxu0 0
        %1323 = vmatpush1.bf16.msra.mxu0 0
        %1324 = vmatprep.subr.bf16.mxu0 0
        %1325 = vmatpush1.bf16.msra.mxu0 0
        %1326 = vmatprep.subr.bf16.mxu0 0
        %1327 = vmatpush1.bf16.msra.mxu0 0
        %1328 = vmatprep.subr.bf16.mxu0 0
        %1329 = vmatpush1.bf16.msra.mxu0 %v1312
        %1330 = vmatprep.subr.bf16.mxu0 0
        %1331 = vmatpush2.bf16.msra.mxu0 0
        %1332 = vmatprep.subr.bf16.mxu0 0
        %1333 = vmatpush2.bf16.msra.mxu0 0
        %1334 = vmatprep.subr.bf16.mxu0 0
        %1335 = vmatpush2.bf16.msra.mxu0 0
        %1336 = vmatprep.subr.bf16.mxu0 0
        %1337 = vmatpush2.bf16.msra.mxu0 0
        %1338 = vmatprep.subr.bf16.mxu0 0
        %1339 = vmatpush2.bf16.msra.mxu0 0
        %1340 = vmatprep.subr.bf16.mxu0 0
        %1341 = vmatpush2.bf16.msra.mxu0 0
        %1342 = vmatprep.subr.bf16.mxu0 0
        %1343 = vmatpush2.bf16.msra.mxu0 0
        %1344 = vmatprep.subr.bf16.mxu0 0
        %1345 = vmatpush2.bf16.msra.mxu0 0
        %1346 = vmatprep.mubr.bf16.mxu0 0
        %1347 = vmatmul.mubr.bf16.gmra.mxu0 %v1309
        %v1348 = vpop.f32.mrf.mxu0
        %v1349 = vadd.f32 0.0, %v1348
        %v1350 = vpop.f32.mrf.mxu0
        %v1351 = vpop.f32.mrf.mxu0
        %v1352 = vpop.f32.mrf.mxu0
        %1353 = vdwg.mxu0
        %v1354 = vadd.f32 %v1192, %v1349
        %1355 = vrot.lane.b32.xlu0 %v877, 104
        %v1356 = vpop.permute.xlu0 %1355
        %1357 = vrot.lane.b32.xlu0 %v878, 104
        %v1358 = vpop.permute.xlu0 %1357
        %v1360 = vsel %vm884, %v1356, 0
        %v1363 = vsel %vm884, %v1358, 0
        %1365 = vmatprep.subr.bf16.mxu0 0
        %1366 = vmatpush1.bf16.xpose.msra.mxu0 0
        %1367 = vmatprep.subr.bf16.mxu0 0
        %1368 = vmatpush1.bf16.xpose.msra.mxu0 0
        %1369 = vmatprep.subr.bf16.mxu0 0
        %1370 = vmatpush1.bf16.xpose.msra.mxu0 0
        %1371 = vmatprep.subr.bf16.mxu0 0
        %1372 = vmatpush1.bf16.xpose.msra.mxu0 0
        %1373 = vmatprep.subr.bf16.mxu0 0
        %1374 = vmatpush1.bf16.xpose.msra.mxu0 0
        %1375 = vmatprep.subr.bf16.mxu0 0
        %1376 = vmatpush1.bf16.xpose.msra.mxu0 0
        %1377 = vmatprep.subr.bf16.mxu0 0
        %1378 = vmatpush1.bf16.xpose.msra.mxu0 0
        %1379 = vmatprep.subr.bf16.mxu0 0
        %1380 = vmatpush1.bf16.xpose.msra.mxu0 %v1363
        %1381 = vmatprep.subr.bf16.mxu0 0
        %1382 = vmatpush2.bf16.xpose.msra.mxu0 0
        %1383 = vmatprep.subr.bf16.mxu0 0
        %1384 = vmatpush2.bf16.xpose.msra.mxu0 0
        %1385 = vmatprep.subr.bf16.mxu0 0
        %1386 = vmatpush2.bf16.xpose.msra.mxu0 0
        %1387 = vmatprep.subr.bf16.mxu0 0
        %1388 = vmatpush2.bf16.xpose.msra.mxu0 0
        %1389 = vmatprep.subr.bf16.mxu0 0
        %1390 = vmatpush2.bf16.xpose.msra.mxu0 0
        %1391 = vmatprep.subr.bf16.mxu0 0
        %1392 = vmatpush2.bf16.xpose.msra.mxu0 0
        %1393 = vmatprep.subr.bf16.mxu0 0
        %1394 = vmatpush2.bf16.xpose.msra.mxu0 0
        %1395 = vmatprep.subr.bf16.mxu0 0
        %1396 = vmatpush2.bf16.xpose.msra.mxu0 0
        %1397 = vmatprep.mubr.bf16.mxu0 0
        %1398 = vmatmul.mubr.bf16.gmra.mxu0 %v1360
        %v1399 = vpop.f32.mrf.mxu0
        %v1400 = vadd.f32 0.0, %v1399
        %v1401 = vpop.f32.mrf.mxu0
        %v1402 = vpop.f32.mrf.mxu0
        %v1403 = vpop.f32.mrf.mxu0
        %1404 = vdwg.mxu0
        %v1405 = vsel %vm884, %v1400, -inf
        %1406 = vmax.xlane.f32.xlu0 %v1405
        %v1407 = vpop.xlane.xlu0 %1406
        %v1408 = vsub.f32 %v1400, %v1407
        %v1409 = vmul.f32 %v1408, 1.442695
        %v1410 = vpow.pop %v1409
        %v1411 = vsel %vm884, %v1410, 0.0
        %1412 = vadd.xlane.f32.xlu0 %v1411
        %v1413 = vpop.xlane.xlu0 %1412
        %v1414 = vrcp.pop %v1413
        %v1415 = vmul.f32 %v1410, %v1414
        %v1416 = vpack.c.bf16 %v1415, %v1415
        %1417 = vrot.lane.b32.xlu0 %v879, 104
        %v1418 = vpop.permute.xlu0 %1417
        %v1420 = vsel %vm884, %v1416, 0
        %v1423 = vsel %vm946, %v1418, 0
        %1425 = vmatprep.subr.bf16.mxu0 0
        %1426 = vmatpush1.bf16.msra.mxu0 0
        %1427 = vmatprep.subr.bf16.mxu0 0
        %1428 = vmatpush1.bf16.msra.mxu0 0
        %1429 = vmatprep.subr.bf16.mxu0 0
        %1430 = vmatpush1.bf16.msra.mxu0 0
        %1431 = vmatprep.subr.bf16.mxu0 0
        %1432 = vmatpush1.bf16.msra.mxu0 0
        %1433 = vmatprep.subr.bf16.mxu0 0
        %1434 = vmatpush1.bf16.msra.mxu0 0
        %1435 = vmatprep.subr.bf16.mxu0 0
        %1436 = vmatpush1.bf16.msra.mxu0 0
        %1437 = vmatprep.subr.bf16.mxu0 0
        %1438 = vmatpush1.bf16.msra.mxu0 0
        %1439 = vmatprep.subr.bf16.mxu0 0
        %1440 = vmatpush1.bf16.msra.mxu0 %v1423
        %1441 = vmatprep.subr.bf16.mxu0 0
        %1442 = vmatpush2.bf16.msra.mxu0 0
        %1443 = vmatprep.subr.bf16.mxu0 0
        %1444 = vmatpush2.bf16.msra.mxu0 0
        %1445 = vmatprep.subr.bf16.mxu0 0
        %1446 = vmatpush2.bf16.msra.mxu0 0
        %1447 = vmatprep.subr.bf16.mxu0 0
        %1448 = vmatpush2.bf16.msra.mxu0 0
        %1449 = vmatprep.subr.bf16.mxu0 0
        %1450 = vmatpush2.bf16.msra.mxu0 0
        %1451 = vmatprep.subr.bf16.mxu0 0
        %1452 = vmatpush2.bf16.msra.mxu0 0
        %1453 = vmatprep.subr.bf16.mxu0 0
        %1454 = vmatpush2.bf16.msra.mxu0 0
        %1455 = vmatprep.subr.bf16.mxu0 0
        %1456 = vmatpush2.bf16.msra.mxu0 0
        %1457 = vmatprep.mubr.bf16.mxu0 0
        %1458 = vmatmul.mubr.bf16.gmra.mxu0 %v1420
        %v1459 = vpop.f32.mrf.mxu0
        %v1460 = vadd.f32 0.0, %v1459
        %v1461 = vpop.f32.mrf.mxu0
        %v1462 = vpop.f32.mrf.mxu0
        %v1463 = vpop.f32.mrf.mxu0
        %1464 = vdwg.mxu0
        %v1465 = vpack.c.bf16 %v1460, %v1460
        %v1467 = vsel %vm884, %v1465, 0
        %v1470 = vsel %vm946, %v883, 0
        %1472 = vmatprep.subr.bf16.mxu0 0
        %1473 = vmatpush1.bf16.msra.mxu0 0
        %1474 = vmatprep.subr.bf16.mxu0 0
        %1475 = vmatpush1.bf16.msra.mxu0 0
        %1476 = vmatprep.subr.bf16.mxu0 0
        %1477 = vmatpush1.bf16.msra.mxu0 0
        %1478 = vmatprep.subr.bf16.mxu0 0
        %1479 = vmatpush1.bf16.msra.mxu0 0
        %1480 = vmatprep.subr.bf16.mxu0 0
        %1481 = vmatpush1.bf16.msra.mxu0 0
        %1482 = vmatprep.subr.bf16.mxu0 0
        %1483 = vmatpush1.bf16.msra.mxu0 0
        %1484 = vmatprep.subr.bf16.mxu0 0
        %1485 = vmatpush1.bf16.msra.mxu0 0
        %1486 = vmatprep.subr.bf16.mxu0 0
        %1487 = vmatpush1.bf16.msra.mxu0 %v1470
        %1488 = vmatprep.subr.bf16.mxu0 0
        %1489 = vmatpush2.bf16.msra.mxu0 0
        %1490 = vmatprep.subr.bf16.mxu0 0
        %1491 = vmatpush2.bf16.msra.mxu0 0
        %1492 = vmatprep.subr.bf16.mxu0 0
        %1493 = vmatpush2.bf16.msra.mxu0 0
        %1494 = vmatprep.subr.bf16.mxu0 0
        %1495 = vmatpush2.bf16.msra.mxu0 0
        %1496 = vmatprep.subr.bf16.mxu0 0
        %1497 = vmatpush2.bf16.msra.mxu0 0
        %1498 = vmatprep.subr.bf16.mxu0 0
        %1499 = vmatpush2.bf16.msra.mxu0 0
        %1500 = vmatprep.subr.bf16.mxu0 0
        %1501 = vmatpush2.bf16.msra.mxu0 0
        %1502 = vmatprep.subr.bf16.mxu0 0
        %1503 = vmatpush2.bf16.msra.mxu0 0
        %1504 = vmatprep.mubr.bf16.mxu0 0
        %1505 = vmatmul.mubr.bf16.gmra.mxu0 %v1467
        %v1506 = vpop.f32.mrf.mxu0
        %v1507 = vadd.f32 0.0, %v1506
        %v1508 = vpop.f32.mrf.mxu0
        %v1509 = vpop.f32.mrf.mxu0
        %v1510 = vpop.f32.mrf.mxu0
        %1511 = vdwg.mxu0
        %v1512 = vadd.f32 %v1354, %v1507
        %v1513 = vld [vmem:[%s11] sm:$0x1]
        %v1515 = vlaneseq
        %v1516 = vshrl.u32 %v1515, 7
        %v1517 = vsub.s32 0, %v1516
        %v1518 = vrot.slane %v1513, %v1517
        %v1520 = vadd.f32 %v1512, %v1518
        %v1521 = vadd.f32 %v668, %v1520
        %v1522 = vsel %vm698, %v1521, 0.0
        %1523 = vadd.xlane.f32.xlu0 %v1522
        %v1524 = vpop.xlane.xlu0 %1523
        %v1525 = vrcp.pop 32.0
        %v1526 = vmul.f32 %v1524, %v1525
        %v1527 = vsub.f32 %v1521, %v1526
        %v1528 = vmul.f32 %v1527, %v1527
        %v1529 = vsel %vm698, %v1528, 0.0
        %1530 = vadd.xlane.f32.xlu0 %v1529
        %v1531 = vpop.xlane.xlu0 %1530
        %v1532 = vmul.f32 %v1531, %v1525
        %v1533 = vadd.f32 %v1532, 1e-05
        %v1534 = vrsqrt.pop %v1533
        %v1535 = vmul.f32 %v1527, %v1534
        %v1536 = vld [vmem:[%s12] sm:$0x1]
        %v1538 = vlaneseq
        %v1539 = vshrl.u32 %v1538, 7
        %v1540 = vsub.s32 0, %v1539
        %v1541 = vrot.slane %v1536, %v1540
        %v1543 = vmul.f32 %v1535, %v1541
        %v1544 = vld [vmem:[%s13] sm:$0x1]
        %v1546 = vlaneseq
        %v1547 = vshrl.u32 %v1546, 7
        %v1548 = vsub.s32 0, %v1547
        %v1549 = vrot.slane %v1544, %v1548
        %v1551 = vadd.f32 %v1543, %v1549
        %1552 = vst.msk [vmem:[%s666] sm:$0xff] %vm698, %v1551
        %s1553 = sand.u32 %s379, 1
        %s1554 = scalar_lea.sflag [#allocation4], %s1553
        %s1555 = sand.u32 %s379, 1
        %s1556 = smul.addr %s1555, 8
        %s1557 = scalar_lea.vmem [#allocation16], %s1556
        // Predicated region
        $region109: #{tpu_custom_call.1} parent=75 // pred_check
          %p1558 = pneg %p389
        $region110: #{tpu_custom_call.1} parent=75 // pred_check_branch
          %1560 = sbr.rel (%p1558) target = $region112
        $region111: #{tpu_custom_call.1} parent=75 // pred_region
          %s1562 = ssub.s32 128, 128
          %1563 = vsyncadd %s1554, %s1562
          %s1564 = sadd.s32 %s44, %s43
          %s1565 = smul.addr %s1564, 128
          %s1566 = scalar_lea.hbm %s14, %s1565
          %s1568 = sshll.u32 %s1557, 4
          %s1569 = int_to_ptr.vmem [resolvable:$true] %s1568
          %1571 = dma.vmem_to_hbm [thread:$0]  %s1569, 128, %s1566, %s1554
        $region112: #{tpu_custom_call.1} parent=75 // pred_fallthru
          _
      $region76: #{tpu_custom_call.1} parent=5 // pred_fallthru
        _
      %p1572 = scmp.le.s32.totalorder 2, %s34
      // Predicated region
      $region113: #{tpu_custom_call.1} parent=5 // pred_check
        %p1573 = pneg %p1572
      $region114: #{tpu_custom_call.1} parent=5 // pred_check_branch
        %1575 = sbr.rel (%p1573) target = $region116
      $region115: #{tpu_custom_call.1} parent=5 // pred_region
        %s1576 = ssub.s32 %s34, 2
        // Predicated region
        $region117: #{tpu_custom_call.1} parent=115 // pred_check
          %p1577 = pneg %p395
        $region118: #{tpu_custom_call.1} parent=115 // pred_check_branch
          %1579 = sbr.rel (%p1577) target = $region120
        $region119: #{tpu_custom_call.1} parent=115 // pred_region
          %s1580 = sand.u32 %s380, 1
          %s1581 = scalar_lea.sflag [#allocation4], %s1580
          %s1582 = sand.u32 %s380, 1
          %s1583 = smul.addr %s1582, 8
          %s1584 = scalar_lea.vmem [#allocation16], %s1583
          %1585 = dma.done %s1581, 128
        $region120: #{tpu_custom_call.1} parent=115 // pred_fallthru
          _
      $region116: #{tpu_custom_call.1} parent=5 // pred_fallthru
        _
    $region6: #{tpu_custom_call.1} parent=1 // loop_footer
      %s38 = sadd.s32 1, %s34
    $region7: #{tpu_custom_call.1} parent=1 // loop_footer_branch
      %33 = sbr.rel target = $region3
    $region8: #{tpu_custom_call.1} parent=1 // loop_exit
      _
    %1586 = vsyncpa [#allocation3], 1
    %s1587 = scalar_lea.sflag [#allocation3], 1
    %1588 = vsyncpa %s1587, 1
    %1589 = vsyncpa [#allocation6], 1
    %s1590 = scalar_lea.sflag [#allocation6], 1
    %1591 = vsyncpa %s1590, 1
    %1592 = vsyncpa [#allocation9], 1
    %s1593 = scalar_lea.sflag [#allocation9], 1
    %1594 = vsyncpa %s1593, 1
    %1595 = vsyncpa [#allocation12], 1
    %1596 = vsyncpa [#allocation15], 1
    %1597 = vsyncpa [#allocation4], 1
    %s1598 = scalar_lea.sflag [#allocation4], 1
    %1599 = vsyncpa %s1598, 1

</llo_original>
